<compile_context>
chip_gen: v7x
topology: tpu7x:2x2x1
jax: 0.10.0
libtpu: 0.0.40
codegen_flags: <defaults>
</compile_context>

<pallas_src>
import functools

import numpy as np
import jax
import jax.numpy as jnp
from jax import lax
from jax.experimental import pallas as pl
from jax.experimental.pallas import tpu as pltpu


# ------------------------------ Pallas kernel ------------------------------ #

def _decoder_kernel(*refs, C0, S, nY, n_mask, layer_cfg):
    """Fully fused Decoder_2D forward.

    refs layout:
      [x, w_lin, b_lin, place, mask_0..mask_{n_mask-1},
       wstack_0, brow_0, wstack_1, brow_1, ..., out, stack_scratch]

    Activations are (C*B, S) f32, rows ordered channel-major (row = c*B + b), flattened
    spatial index s = ix*nY + iy on the lane axis (S = nX*nY).
    """
    x_ref, wlin_ref, blin_ref, place_ref = refs[0], refs[1], refs[2], refs[3]
    mask_refs = refs[4:4 + n_mask]
    n_layers = len(layer_cfg)
    conv_refs = refs[4 + n_mask:4 + n_mask + 2 * n_layers]
    o_ref = refs[4 + n_mask + 2 * n_layers]
    stack_ref = refs[-1]                       # VMEM scratch (max_rows, S)

    # Linear layer: (B, D) @ (D, C0*S) + (1, C0*S) -> (B, C0*S), lane-dense output.
    y = jnp.dot(x_ref[...], wlin_ref[...],
                preferred_element_type=jnp.float32) + blin_ref[...]

    # torch's .reshape(B, C0, nX, nY): scatter the linear output into the (C0*B, S)
    # activation layout with tiny placement matmuls (lane-tile-aligned slices of y).
    act = jnp.dot(place_ref[0], y[:, 0:S], preferred_element_type=jnp.float32)
    for c in range(1, C0):
        act = act + jnp.dot(place_ref[c], y[:, c * S:(c + 1) * S],
                            preferred_element_type=jnp.float32)

    for i, (K, m_idx, cin_b, cout_b) in enumerate(layer_cfg):
        w_ref = conv_refs[2 * i]        # (Cout*B, K*K*Cin*B)  hstack of kron(W_tap, I_B)
        b_ref = conv_refs[2 * i + 1]    # (Cout*B, 1)
        mask_ref = mask_refs[m_idx]     # (K*K, S) 0/1 boundary masks
        p = K // 2

        # Build the K-stacked activation matrix: tap (kh,kw) wants
        #   shifted[:, s] = act[:, s + delta]   (delta = (kh-p)*nY + (kw-p)),  0 if OOB.
        # pltpu.roll follows jnp.roll semantics (out[j] = in[(j - shift) mod S]),
        # so shift = (-delta) mod S; the mask zeroes exactly the wrapped / cross-row lanes.
        for kh in range(K):
            for kw in range(K):
                t = kh * K + kw
                delta = (kh - p) * nY + (kw - p)
                if delta == 0:
                    sh = act
                else:
                    sh = pltpu.roll(act, (-delta) % S, 1)
                stack_ref[t * cin_b:(t + 1) * cin_b, :] = sh * mask_ref[t:t + 1, :]

        # One MXU matmul per layer (K = K*K*Cin*B contraction), bias added on the VPU.
        acc = jnp.dot(w_ref[...], stack_ref[0:K * K * cin_b, :],
                      preferred_element_type=jnp.float32) + b_ref[...]
        act = jnp.maximum(acc, 0.0) if i < n_layers - 1 else acc

    o_ref[...] = act.astype(o_ref.dtype)


# ------------------------- host-side precomputation ------------------------ #

def _tap_masks(K, H, W):
    """(K*K, H*W) 0/1 masks.  mask[t, h*W+w] = 1 iff the tap's source pixel
    (h + kh - p, w + kw - p) is inside the image (stride-1 'same' cross-correlation)."""
    p = K // 2
    m = np.zeros((K * K, H * W), np.float32)
    for kh in range(K):
        for kw in range(K):
            dh, dw = kh - p, kw - p
            t = kh * K + kw
            for h in range(H):
                if not (0 <= h + dh < H):
                    continue
                for w in range(W):
                    if not (0 <= w + dw < W):
                        continue
                    m[t, h * W + w] = 1.0
    return m


def prepare_decoder(params, channels_list, nX, nY, batch):
    """Precompute all constant operands once and return a jitted forward(x) callable."""
    w_lin, b_lin, convs = params
    B, S, C0 = batch, nX * nY, channels_list[0]
    C_last = channels_list[-1]

    # Placement matrices: place[c] puts the B linear-output rows at activation rows c*B..c*B+B-1.
    place = np.zeros((C0, C0 * B, B), np.float32)
    for c in range(C0):
        place[c, c * B:(c + 1) * B, :] = np.eye(B, dtype=np.float32)

    eye_b = np.eye(B, dtype=np.float32)
    mask_keys, masks, layer_cfg, conv_inputs = [], [], [], []
    max_rows = 8
    for (w, bias, k) in convs:
        # Stride-1, odd-K, padding=(K-1)//2 keeps the spatial size (the module's config).
        assert k % 2 == 1, "odd kernel size / stride-1 ConvTranspose2d assumed"
        if k not in mask_keys:                      # share masks across equal-K layers
            mask_keys.append(k)
            masks.append(jnp.asarray(_tap_masks(k, nX, nY)))

        w_np = np.asarray(w)                                          # (Cin, Cout, K, K)
        cin, cout = w_np.shape[0], w_np.shape[1]
        # cross-correlation tap weights: W_tap[kh,kw,co,ci] = w[ci,co,K-1-kh,K-1-kw]
        w_taps = np.transpose(w_np[:, :, ::-1, ::-1], (2, 3, 1, 0))   # (K, K, Cout, Cin)
        # hstack kron(W_tap, I_B) over taps -> one (Cout*B, K*K*Cin*B) weight per layer.
        wk = np.concatenate([np.kron(w_taps[kh, kw], eye_b)
                             for kh in range(k) for kw in range(k)],
                            axis=1).astype(np.float32)
        brow = np.repeat(np.asarray(bias), B).reshape(-1, 1).astype(np.float32)
        conv_inputs += [jnp.asarray(wk), jnp.asarray(brow)]
        layer_cfg.append((k, mask_keys.index(k), cin * B, cout * B))
        max_rows = max(max_rows, k * k * cin * B)
    max_rows = ((max_rows + 7) // 8) * 8           # sublane-tile aligned scratch

    kernel = functools.partial(_decoder_kernel, C0=C0, S=S, nY=nY,
                               n_mask=len(masks), layer_cfg=tuple(layer_cfg))
    n_in = 4 + len(masks) + len(conv_inputs)
    call = pl.pallas_call(
        kernel,
        out_shape=jax.ShapeDtypeStruct((C_last * B, S), jnp.float32),
        in_specs=[pl.BlockSpec(memory_space=pltpu.MemorySpace.VMEM)] * n_in,
        out_specs=pl.BlockSpec(memory_space=pltpu.MemorySpace.VMEM),
        scratch_shapes=[pltpu.VMEM((max_rows, S), jnp.float32)],
    )

    wlin_j = jnp.asarray(w_lin)
    blin_j = jnp.asarray(b_lin)
    place_j = jnp.asarray(place)
    masks_t = tuple(masks)
    conv_t = tuple(conv_inputs)

    def forward(x):
        out2d = call(x, wlin_j, blin_j, place_j, *masks_t, *conv_t)    # (C_last*B, S)
        # rows are (c*B + b), lanes are ix*nY + iy -> NCHW like the torch module.
        return out2d.reshape(C_last, B, nX, nY).transpose(1, 0, 2, 3)

    return jax.jit(forward)


# --------------------------- parameters / reference ------------------------ #

def init_params(key, latent_dimn, fc_outputsize, channels_list, ksize):
    """Deterministic xavier-uniform-style init (shapes match the torch module)."""
    ksize = ksize[::-1]                      # module reverses the ksize list
    n_layers = len(channels_list) - 1
    keys = jax.random.split(key, 2 + 2 * n_layers)

    # Linear(latent_dimn, fc_outputsize); stored transposed as (Din, Dout).
    bw = (6.0 / (latent_dimn + fc_outputsize)) ** 0.5
    w_lin = jax.random.uniform(keys[0], (latent_dimn, fc_outputsize),
                               jnp.float32, -bw, bw)
    bb = 1.0 / (latent_dimn ** 0.5)
    b_lin = jax.random.uniform(keys[1], (1, fc_outputsize), jnp.float32, -bb, bb)

    convs = []
    for i in range(n_layers):
        cin, cout, k = channels_list[i], channels_list[i + 1], ksize[i]
        fan_in, fan_out = cout * k * k, cin * k * k   # torch convention for ConvT weight
        wb = (6.0 / (fan_in + fan_out)) ** 0.5
        w = jax.random.uniform(keys[2 + 2 * i], (cin, cout, k, k),
                               jnp.float32, -wb, wb)
        bbnd = 1.0 / (fan_in ** 0.5)
        b = jax.random.uniform(keys[3 + 2 * i], (cout,), jnp.float32, -bbnd, bbnd)
        convs.append((w, b, k))
    return w_lin, b_lin, convs


def decoder_2d_ref(x, params, channels_list, nX, nY):
    """Pure-JAX reference (no Pallas) for correctness checking."""
    w_lin, b_lin, convs = params
    B = x.shape[0]
    y = x @ w_lin + b_lin
    y = y.reshape(B, channels_list[0], nX, nY).transpose(0, 2, 3, 1)
    n_layers = len(convs)
    for i, (w, b, k) in enumerate(convs):
        p_c = k - 1 - (k - 1) // 2
        w_conv = jnp.transpose(w[:, :, ::-1, ::-1], (2, 3, 0, 1))
        y = lax.conv_general_dilated(
            y, w_conv, (1, 1), [(p_c, p_c), (p_c, p_c)],
            dimension_numbers=('NHWC', 'HWIO', 'NHWC'))
        y = y + b.reshape(1, 1, 1, -1)
        if i < n_layers - 1:
            y = jnp.maximum(y, 0.0)
    return y.transpose(0, 3, 1, 2)


# ----------------------------------- main ----------------------------------- #

if __name__ == "__main__":
    latent_dimn = 8
    nX = nY = 16
    channels_list = [4, 8, 4, 1]
    ksize = [3, 3, 3]
    fc_outputsize = channels_list[0] * nX * nY   # 4*16*16 = 1024
    batch = 2

    key = jax.random.PRNGKey(0)
    pkey, xkey = jax.random.split(key)
    params = init_params(pkey, latent_dimn, fc_outputsize, channels_list, ksize)
    x = jax.random.normal(xkey, (batch, latent_dimn), jnp.float32)

    fwd = prepare_decoder(params, channels_list, nX, nY, batch)
    out = jax.block_until_ready(fwd(x))

    ref = jax.block_until_ready(decoder_2d_ref(x, params, channels_list, nX, nY))
    assert out.shape == (batch, channels_list[-1], nX, nY), out.shape
    err = float(jnp.max(jnp.abs(out - ref)))
    assert jnp.allclose(out, ref, atol=1e-3, rtol=1e-3), err

    print("KERNEL_OK")
</pallas_src>

<mosaic_0001>
module attributes {stable_mosaic.version = 11 : i64} {
  func.func @_decoder_kernel(%arg0: memref<2x8xf32, #tpu.memory_space<vmem>>, %arg1: memref<8x1024xf32, #tpu.memory_space<vmem>>, %arg2: memref<1x1024xf32, #tpu.memory_space<vmem>>, %arg3: memref<4x8x2xf32, #tpu.memory_space<vmem>>, %arg4: memref<9x256xf32, #tpu.memory_space<vmem>>, %arg5: memref<16x72xf32, #tpu.memory_space<vmem>>, %arg6: memref<16x1xf32, #tpu.memory_space<vmem>>, %arg7: memref<8x144xf32, #tpu.memory_space<vmem>>, %arg8: memref<8x1xf32, #tpu.memory_space<vmem>>, %arg9: memref<2x72xf32, #tpu.memory_space<vmem>>, %arg10: memref<2x1xf32, #tpu.memory_space<vmem>>, %arg11: memref<2x256xf32, #tpu.memory_space<vmem>>, %arg12: memref<144x256xf32, #tpu.memory_space<vmem>>) attributes {dimension_semantics = [], scalar_prefetch = 0 : i64, scratch_operands = 1 : i64, tpu.core_type = #tpu.core_type<tc>} {
    %c0 = arith.constant 0 : index
    %c0_0 = arith.constant 0 : index
    %0 = vector.load %arg0[%c0, %c0_0] : memref<2x8xf32, #tpu.memory_space<vmem>>, vector<2x8xf32>
    %c0_1 = arith.constant 0 : index
    %c0_2 = arith.constant 0 : index
    %1 = vector.load %arg1[%c0_1, %c0_2] : memref<8x1024xf32, #tpu.memory_space<vmem>>, vector<8x1024xf32>
    %cst = arith.constant dense<0.000000e+00> : vector<2x1024xf32>
    %2 = tpu.matmul %0, %1, %cst {dimension_numbers = #tpu.dot_dimension_numbers<[1], [0], [0], [1], [0, 0, 1, 1], [], []>} : vector<2x8xf32>, vector<8x1024xf32>, vector<2x1024xf32> -> vector<2x1024xf32>
    %c0_3 = arith.constant 0 : index
    %c0_4 = arith.constant 0 : index
    %3 = vector.load %arg2[%c0_3, %c0_4] : memref<1x1024xf32, #tpu.memory_space<vmem>>, vector<1x1024xf32>
    %4 = vector.broadcast %3 : vector<1x1024xf32> to vector<2x1024xf32>
    %5 = arith.addf %2, %4 : vector<2x1024xf32>
    %c0_5 = arith.constant 0 : index
    %c0_6 = arith.constant 0 : index
    %c0_7 = arith.constant 0 : index
    %6 = vector.load %arg3[%c0_5, %c0_6, %c0_7] : memref<4x8x2xf32, #tpu.memory_space<vmem>>, vector<1x8x2xf32>
    %7 = vector.shape_cast %6 : vector<1x8x2xf32> to vector<8x2xf32>
    %8 = vector.extract_strided_slice %5 {offsets = [0, 0], sizes = [2, 256], strides = [1, 1]} : vector<2x1024xf32> to vector<2x256xf32>
    %cst_8 = arith.constant dense<0.000000e+00> : vector<8x256xf32>
    %9 = tpu.matmul %7, %8, %cst_8 {dimension_numbers = #tpu.dot_dimension_numbers<[1], [0], [0], [1], [0, 0, 1, 1], [], []>} : vector<8x2xf32>, vector<2x256xf32>, vector<8x256xf32> -> vector<8x256xf32>
    %c1 = arith.constant 1 : index
    %c0_9 = arith.constant 0 : index
    %c0_10 = arith.constant 0 : index
    %10 = vector.load %arg3[%c1, %c0_9, %c0_10] : memref<4x8x2xf32, #tpu.memory_space<vmem>>, vector<1x8x2xf32>
    %11 = vector.shape_cast %10 : vector<1x8x2xf32> to vector<8x2xf32>
    %12 = vector.extract_strided_slice %5 {offsets = [0, 256], sizes = [2, 256], strides = [1, 1]} : vector<2x1024xf32> to vector<2x256xf32>
    %cst_11 = arith.constant dense<0.000000e+00> : vector<8x256xf32>
    %13 = tpu.matmul %11, %12, %cst_11 {dimension_numbers = #tpu.dot_dimension_numbers<[1], [0], [0], [1], [0, 0, 1, 1], [], []>} : vector<8x2xf32>, vector<2x256xf32>, vector<8x256xf32> -> vector<8x256xf32>
    %14 = arith.addf %9, %13 : vector<8x256xf32>
    %c2 = arith.constant 2 : index
    %c0_12 = arith.constant 0 : index
    %c0_13 = arith.constant 0 : index
    %15 = vector.load %arg3[%c2, %c0_12, %c0_13] : memref<4x8x2xf32, #tpu.memory_space<vmem>>, vector<1x8x2xf32>
    %16 = vector.shape_cast %15 : vector<1x8x2xf32> to vector<8x2xf32>
    %17 = vector.extract_strided_slice %5 {offsets = [0, 512], sizes = [2, 256], strides = [1, 1]} : vector<2x1024xf32> to vector<2x256xf32>
    %cst_14 = arith.constant dense<0.000000e+00> : vector<8x256xf32>
    %18 = tpu.matmul %16, %17, %cst_14 {dimension_numbers = #tpu.dot_dimension_numbers<[1], [0], [0], [1], [0, 0, 1, 1], [], []>} : vector<8x2xf32>, vector<2x256xf32>, vector<8x256xf32> -> vector<8x256xf32>
    %19 = arith.addf %14, %18 : vector<8x256xf32>
    %c3 = arith.constant 3 : index
    %c0_15 = arith.constant 0 : index
    %c0_16 = arith.constant 0 : index
    %20 = vector.load %arg3[%c3, %c0_15, %c0_16] : memref<4x8x2xf32, #tpu.memory_space<vmem>>, vector<1x8x2xf32>
    %21 = vector.shape_cast %20 : vector<1x8x2xf32> to vector<8x2xf32>
    %22 = vector.extract_strided_slice %5 {offsets = [0, 768], sizes = [2, 256], strides = [1, 1]} : vector<2x1024xf32> to vector<2x256xf32>
    %cst_17 = arith.constant dense<0.000000e+00> : vector<8x256xf32>
    %23 = tpu.matmul %21, %22, %cst_17 {dimension_numbers = #tpu.dot_dimension_numbers<[1], [0], [0], [1], [0, 0, 1, 1], [], []>} : vector<8x2xf32>, vector<2x256xf32>, vector<8x256xf32> -> vector<8x256xf32>
    %24 = arith.addf %19, %23 : vector<8x256xf32>
    %c17_i32 = arith.constant 17 : i32
    %25 = tpu.dynamic_rotate %24 by %c17_i32 dim 1 : vector<8x256xf32>, i32 -> vector<8x256xf32>
    %c0_18 = arith.constant 0 : index
    %c0_19 = arith.constant 0 : index
    %26 = vector.load %arg4[%c0_18, %c0_19] : memref<9x256xf32, #tpu.memory_space<vmem>>, vector<1x256xf32>
    %27 = vector.broadcast %26 : vector<1x256xf32> to vector<8x256xf32>
    %28 = arith.mulf %25, %27 : vector<8x256xf32>
    %c0_20 = arith.constant 0 : index
    %c0_21 = arith.constant 0 : index
    %29 = vector.load %arg12[%c0_20, %c0_21] : memref<144x256xf32, #tpu.memory_space<vmem>>, vector<8x256xf32>
    tpu.vector_store %arg12[%c0_20, %c0_21], %28 {strides = array<i32>} : memref<144x256xf32, #tpu.memory_space<vmem>>, vector<8x256xf32>,
    %c16_i32 = arith.constant 16 : i32
    %30 = tpu.dynamic_rotate %24 by %c16_i32 dim 1 : vector<8x256xf32>, i32 -> vector<8x256xf32>
    %c1_22 = arith.constant 1 : index
    %c0_23 = arith.constant 0 : index
    %31 = vector.load %arg4[%c1_22, %c0_23] : memref<9x256xf32, #tpu.memory_space<vmem>>, vector<1x256xf32>
    %32 = vector.broadcast %31 : vector<1x256xf32> to vector<8x256xf32>
    %33 = arith.mulf %30, %32 : vector<8x256xf32>
    %c8 = arith.constant 8 : index
    %c0_24 = arith.constant 0 : index
    %34 = vector.load %arg12[%c8, %c0_24] : memref<144x256xf32, #tpu.memory_space<vmem>>, vector<8x256xf32>
    tpu.vector_store %arg12[%c8, %c0_24], %33 {strides = array<i32>} : memref<144x256xf32, #tpu.memory_space<vmem>>, vector<8x256xf32>,
    %c15_i32 = arith.constant 15 : i32
    %35 = tpu.dynamic_rotate %24 by %c15_i32 dim 1 : vector<8x256xf32>, i32 -> vector<8x256xf32>
    %c2_25 = arith.constant 2 : index
    %c0_26 = arith.constant 0 : index
    %36 = vector.load %arg4[%c2_25, %c0_26] : memref<9x256xf32, #tpu.memory_space<vmem>>, vector<1x256xf32>
    %37 = vector.broadcast %36 : vector<1x256xf32> to vector<8x256xf32>
    %38 = arith.mulf %35, %37 : vector<8x256xf32>
    %c16 = arith.constant 16 : index
    %c0_27 = arith.constant 0 : index
    %39 = vector.load %arg12[%c16, %c0_27] : memref<144x256xf32, #tpu.memory_space<vmem>>, vector<8x256xf32>
    tpu.vector_store %arg12[%c16, %c0_27], %38 {strides = array<i32>} : memref<144x256xf32, #tpu.memory_space<vmem>>, vector<8x256xf32>,
    %c1_i32 = arith.constant 1 : i32
    %40 = tpu.dynamic_rotate %24 by %c1_i32 dim 1 : vector<8x256xf32>, i32 -> vector<8x256xf32>
    %c3_28 = arith.constant 3 : index
    %c0_29 = arith.constant 0 : index
    %41 = vector.load %arg4[%c3_28, %c0_29] : memref<9x256xf32, #tpu.memory_space<vmem>>, vector<1x256xf32>
    %42 = vector.broadcast %41 : vector<1x256xf32> to vector<8x256xf32>
    %43 = arith.mulf %40, %42 : vector<8x256xf32>
    %c24 = arith.constant 24 : index
    %c0_30 = arith.constant 0 : index
    %44 = vector.load %arg12[%c24, %c0_30] : memref<144x256xf32, #tpu.memory_space<vmem>>, vector<8x256xf32>
    tpu.vector_store %arg12[%c24, %c0_30], %43 {strides = array<i32>} : memref<144x256xf32, #tpu.memory_space<vmem>>, vector<8x256xf32>,
    %c4 = arith.constant 4 : index
    %c0_31 = arith.constant 0 : index
    %45 = vector.load %arg4[%c4, %c0_31] : memref<9x256xf32, #tpu.memory_space<vmem>>, vector<1x256xf32>
    %46 = vector.broadcast %45 : vector<1x256xf32> to vector<8x256xf32>
    %47 = arith.mulf %24, %46 : vector<8x256xf32>
    %c32 = arith.constant 32 : index
    %c0_32 = arith.constant 0 : index
    %48 = vector.load %arg12[%c32, %c0_32] : memref<144x256xf32, #tpu.memory_space<vmem>>, vector<8x256xf32>
    tpu.vector_store %arg12[%c32, %c0_32], %47 {strides = array<i32>} : memref<144x256xf32, #tpu.memory_space<vmem>>, vector<8x256xf32>,
    %c255_i32 = arith.constant 255 : i32
    %49 = tpu.dynamic_rotate %24 by %c255_i32 dim 1 : vector<8x256xf32>, i32 -> vector<8x256xf32>
    %c5 = arith.constant 5 : index
    %c0_33 = arith.constant 0 : index
    %50 = vector.load %arg4[%c5, %c0_33] : memref<9x256xf32, #tpu.memory_space<vmem>>, vector<1x256xf32>
    %51 = vector.broadcast %50 : vector<1x256xf32> to vector<8x256xf32>
    %52 = arith.mulf %49, %51 : vector<8x256xf32>
    %c40 = arith.constant 40 : index
    %c0_34 = arith.constant 0 : index
    %53 = vector.load %arg12[%c40, %c0_34] : memref<144x256xf32, #tpu.memory_space<vmem>>, vector<8x256xf32>
    tpu.vector_store %arg12[%c40, %c0_34], %52 {strides = array<i32>} : memref<144x256xf32, #tpu.memory_space<vmem>>, vector<8x256xf32>,
    %c241_i32 = arith.constant 241 : i32
    %54 = tpu.dynamic_rotate %24 by %c241_i32 dim 1 : vector<8x256xf32>, i32 -> vector<8x256xf32>
    %c6 = arith.constant 6 : index
    %c0_35 = arith.constant 0 : index
    %55 = vector.load %arg4[%c6, %c0_35] : memref<9x256xf32, #tpu.memory_space<vmem>>, vector<1x256xf32>
    %56 = vector.broadcast %55 : vector<1x256xf32> to vector<8x256xf32>
    %57 = arith.mulf %54, %56 : vector<8x256xf32>
    %c48 = arith.constant 48 : index
    %c0_36 = arith.constant 0 : index
    %58 = vector.load %arg12[%c48, %c0_36] : memref<144x256xf32, #tpu.memory_space<vmem>>, vector<8x256xf32>
    tpu.vector_store %arg12[%c48, %c0_36], %57 {strides = array<i32>} : memref<144x256xf32, #tpu.memory_space<vmem>>, vector<8x256xf32>,
    %c240_i32 = arith.constant 240 : i32
    %59 = tpu.dynamic_rotate %24 by %c240_i32 dim 1 : vector<8x256xf32>, i32 -> vector<8x256xf32>
    %c7 = arith.constant 7 : index
    %c0_37 = arith.constant 0 : index
    %60 = vector.load %arg4[%c7, %c0_37] : memref<9x256xf32, #tpu.memory_space<vmem>>, vector<1x256xf32>
    %61 = vector.broadcast %60 : vector<1x256xf32> to vector<8x256xf32>
    %62 = arith.mulf %59, %61 : vector<8x256xf32>
    %c56 = arith.constant 56 : index
    %c0_38 = arith.constant 0 : index
    %63 = vector.load %arg12[%c56, %c0_38] : memref<144x256xf32, #tpu.memory_space<vmem>>, vector<8x256xf32>
    tpu.vector_store %arg12[%c56, %c0_38], %62 {strides = array<i32>} : memref<144x256xf32, #tpu.memory_space<vmem>>, vector<8x256xf32>,
    %c239_i32 = arith.constant 239 : i32
    %64 = tpu.dynamic_rotate %24 by %c239_i32 dim 1 : vector<8x256xf32>, i32 -> vector<8x256xf32>
    %c8_39 = arith.constant 8 : index
    %c0_40 = arith.constant 0 : index
    %65 = vector.load %arg4[%c8_39, %c0_40] : memref<9x256xf32, #tpu.memory_space<vmem>>, vector<1x256xf32>
    %66 = vector.broadcast %65 : vector<1x256xf32> to vector<8x256xf32>
    %67 = arith.mulf %64, %66 : vector<8x256xf32>
    %c64 = arith.constant 64 : index
    %c0_41 = arith.constant 0 : index
    %68 = vector.load %arg12[%c64, %c0_41] : memref<144x256xf32, #tpu.memory_space<vmem>>, vector<8x256xf32>
    tpu.vector_store %arg12[%c64, %c0_41], %67 {strides = array<i32>} : memref<144x256xf32, #tpu.memory_space<vmem>>, vector<8x256xf32>,
    %c0_42 = arith.constant 0 : index
    %c0_43 = arith.constant 0 : index
    %69 = vector.load %arg5[%c0_42, %c0_43] : memref<16x72xf32, #tpu.memory_space<vmem>>, vector<16x72xf32>
    %c0_44 = arith.constant 0 : index
    %c0_45 = arith.constant 0 : index
    %70 = vector.load %arg12[%c0_44, %c0_45] : memref<144x256xf32, #tpu.memory_space<vmem>>, vector<72x256xf32>
    %cst_46 = arith.constant dense<0.000000e+00> : vector<16x256xf32>
    %71 = tpu.matmul %69, %70, %cst_46 {dimension_numbers = #tpu.dot_dimension_numbers<[1], [0], [0], [1], [0, 0, 1, 1], [], []>} : vector<16x72xf32>, vector<72x256xf32>, vector<16x256xf32> -> vector<16x256xf32>
    %c0_47 = arith.constant 0 : index
    %c0_48 = arith.constant 0 : index
    %72 = vector.load %arg6[%c0_47, %c0_48] : memref<16x1xf32, #tpu.memory_space<vmem>>, vector<16x1xf32>
    %73 = vector.broadcast %72 : vector<16x1xf32> to vector<16x256xf32>
    %74 = arith.addf %71, %73 : vector<16x256xf32>
    %cst_49 = arith.constant 0.000000e+00 : f32
    %75 = vector.broadcast %cst_49 : f32 to vector<16x256xf32>
    %76 = arith.maximumf %74, %75 : vector<16x256xf32>
    %c17_i32_50 = arith.constant 17 : i32
    %77 = tpu.dynamic_rotate %76 by %c17_i32_50 dim 1 : vector<16x256xf32>, i32 -> vector<16x256xf32>
    %c0_51 = arith.constant 0 : index
    %c0_52 = arith.constant 0 : index
    %78 = vector.load %arg4[%c0_51, %c0_52] : memref<9x256xf32, #tpu.memory_space<vmem>>, vector<1x256xf32>
    %79 = vector.broadcast %78 : vector<1x256xf32> to vector<16x256xf32>
    %80 = arith.mulf %77, %79 : vector<16x256xf32>
    %c0_53 = arith.constant 0 : index
    %c0_54 = arith.constant 0 : index
    %81 = vector.load %arg12[%c0_53, %c0_54] : memref<144x256xf32, #tpu.memory_space<vmem>>, vector<16x256xf32>
    tpu.vector_store %arg12[%c0_53, %c0_54], %80 {strides = array<i32>} : memref<144x256xf32, #tpu.memory_space<vmem>>, vector<16x256xf32>,
    %c16_i32_55 = arith.constant 16 : i32
    %82 = tpu.dynamic_rotate %76 by %c16_i32_55 dim 1 : vector<16x256xf32>, i32 -> vector<16x256xf32>
    %c1_56 = arith.constant 1 : index
    %c0_57 = arith.constant 0 : index
    %83 = vector.load %arg4[%c1_56, %c0_57] : memref<9x256xf32, #tpu.memory_space<vmem>>, vector<1x256xf32>
    %84 = vector.broadcast %83 : vector<1x256xf32> to vector<16x256xf32>
    %85 = arith.mulf %82, %84 : vector<16x256xf32>
    %c16_58 = arith.constant 16 : index
    %c0_59 = arith.constant 0 : index
    %86 = vector.load %arg12[%c16_58, %c0_59] : memref<144x256xf32, #tpu.memory_space<vmem>>, vector<16x256xf32>
    tpu.vector_store %arg12[%c16_58, %c0_59], %85 {strides = array<i32>} : memref<144x256xf32, #tpu.memory_space<vmem>>, vector<16x256xf32>,
    %c15_i32_60 = arith.constant 15 : i32
    %87 = tpu.dynamic_rotate %76 by %c15_i32_60 dim 1 : vector<16x256xf32>, i32 -> vector<16x256xf32>
    %c2_61 = arith.constant 2 : index
    %c0_62 = arith.constant 0 : index
    %88 = vector.load %arg4[%c2_61, %c0_62] : memref<9x256xf32, #tpu.memory_space<vmem>>, vector<1x256xf32>
    %89 = vector.broadcast %88 : vector<1x256xf32> to vector<16x256xf32>
    %90 = arith.mulf %87, %89 : vector<16x256xf32>
    %c32_63 = arith.constant 32 : index
    %c0_64 = arith.constant 0 : index
    %91 = vector.load %arg12[%c32_63, %c0_64] : memref<144x256xf32, #tpu.memory_space<vmem>>, vector<16x256xf32>
    tpu.vector_store %arg12[%c32_63, %c0_64], %90 {strides = array<i32>} : memref<144x256xf32, #tpu.memory_space<vmem>>, vector<16x256xf32>,
    %c1_i32_65 = arith.constant 1 : i32
    %92 = tpu.dynamic_rotate %76 by %c1_i32_65 dim 1 : vector<16x256xf32>, i32 -> vector<16x256xf32>
    %c3_66 = arith.constant 3 : index
    %c0_67 = arith.constant 0 : index
    %93 = vector.load %arg4[%c3_66, %c0_67] : memref<9x256xf32, #tpu.memory_space<vmem>>, vector<1x256xf32>
    %94 = vector.broadcast %93 : vector<1x256xf32> to vector<16x256xf32>
    %95 = arith.mulf %92, %94 : vector<16x256xf32>
    %c48_68 = arith.constant 48 : index
    %c0_69 = arith.constant 0 : index
    %96 = vector.load %arg12[%c48_68, %c0_69] : memref<144x256xf32, #tpu.memory_space<vmem>>, vector<16x256xf32>
    tpu.vector_store %arg12[%c48_68, %c0_69], %95 {strides = array<i32>} : memref<144x256xf32, #tpu.memory_space<vmem>>, vector<16x256xf32>,
    %c4_70 = arith.constant 4 : index
    %c0_71 = arith.constant 0 : index
    %97 = vector.load %arg4[%c4_70, %c0_71] : memref<9x256xf32, #tpu.memory_space<vmem>>, vector<1x256xf32>
    %98 = vector.broadcast %97 : vector<1x256xf32> to vector<16x256xf32>
    %99 = arith.mulf %76, %98 : vector<16x256xf32>
    %c64_72 = arith.constant 64 : index
    %c0_73 = arith.constant 0 : index
    %100 = vector.load %arg12[%c64_72, %c0_73] : memref<144x256xf32, #tpu.memory_space<vmem>>, vector<16x256xf32>
    tpu.vector_store %arg12[%c64_72, %c0_73], %99 {strides = array<i32>} : memref<144x256xf32, #tpu.memory_space<vmem>>, vector<16x256xf32>,
    %c255_i32_74 = arith.constant 255 : i32
    %101 = tpu.dynamic_rotate %76 by %c255_i32_74 dim 1 : vector<16x256xf32>, i32 -> vector<16x256xf32>
    %c5_75 = arith.constant 5 : index
    %c0_76 = arith.constant 0 : index
    %102 = vector.load %arg4[%c5_75, %c0_76] : memref<9x256xf32, #tpu.memory_space<vmem>>, vector<1x256xf32>
    %103 = vector.broadcast %102 : vector<1x256xf32> to vector<16x256xf32>
    %104 = arith.mulf %101, %103 : vector<16x256xf32>
    %c80 = arith.constant 80 : index
    %c0_77 = arith.constant 0 : index
    %105 = vector.load %arg12[%c80, %c0_77] : memref<144x256xf32, #tpu.memory_space<vmem>>, vector<16x256xf32>
    tpu.vector_store %arg12[%c80, %c0_77], %104 {strides = array<i32>} : memref<144x256xf32, #tpu.memory_space<vmem>>, vector<16x256xf32>,
    %c241_i32_78 = arith.constant 241 : i32
    %106 = tpu.dynamic_rotate %76 by %c241_i32_78 dim 1 : vector<16x256xf32>, i32 -> vector<16x256xf32>
    %c6_79 = arith.constant 6 : index
    %c0_80 = arith.constant 0 : index
    %107 = vector.load %arg4[%c6_79, %c0_80] : memref<9x256xf32, #tpu.memory_space<vmem>>, vector<1x256xf32>
    %108 = vector.broadcast %107 : vector<1x256xf32> to vector<16x256xf32>
    %109 = arith.mulf %106, %108 : vector<16x256xf32>
    %c96 = arith.constant 96 : index
    %c0_81 = arith.constant 0 : index
    %110 = vector.load %arg12[%c96, %c0_81] : memref<144x256xf32, #tpu.memory_space<vmem>>, vector<16x256xf32>
    tpu.vector_store %arg12[%c96, %c0_81], %109 {strides = array<i32>} : memref<144x256xf32, #tpu.memory_space<vmem>>, vector<16x256xf32>,
    %c240_i32_82 = arith.constant 240 : i32
    %111 = tpu.dynamic_rotate %76 by %c240_i32_82 dim 1 : vector<16x256xf32>, i32 -> vector<16x256xf32>
    %c7_83 = arith.constant 7 : index
    %c0_84 = arith.constant 0 : index
    %112 = vector.load %arg4[%c7_83, %c0_84] : memref<9x256xf32, #tpu.memory_space<vmem>>, vector<1x256xf32>
    %113 = vector.broadcast %112 : vector<1x256xf32> to vector<16x256xf32>
    %114 = arith.mulf %111, %113 : vector<16x256xf32>
    %c112 = arith.constant 112 : index
    %c0_85 = arith.constant 0 : index
    %115 = vector.load %arg12[%c112, %c0_85] : memref<144x256xf32, #tpu.memory_space<vmem>>, vector<16x256xf32>
    tpu.vector_store %arg12[%c112, %c0_85], %114 {strides = array<i32>} : memref<144x256xf32, #tpu.memory_space<vmem>>, vector<16x256xf32>,
    %c239_i32_86 = arith.constant 239 : i32
    %116 = tpu.dynamic_rotate %76 by %c239_i32_86 dim 1 : vector<16x256xf32>, i32 -> vector<16x256xf32>
    %c8_87 = arith.constant 8 : index
    %c0_88 = arith.constant 0 : index
    %117 = vector.load %arg4[%c8_87, %c0_88] : memref<9x256xf32, #tpu.memory_space<vmem>>, vector<1x256xf32>
    %118 = vector.broadcast %117 : vector<1x256xf32> to vector<16x256xf32>
    %119 = arith.mulf %116, %118 : vector<16x256xf32>
    %c128 = arith.constant 128 : index
    %c0_89 = arith.constant 0 : index
    %120 = vector.load %arg12[%c128, %c0_89] : memref<144x256xf32, #tpu.memory_space<vmem>>, vector<16x256xf32>
    tpu.vector_store %arg12[%c128, %c0_89], %119 {strides = array<i32>} : memref<144x256xf32, #tpu.memory_space<vmem>>, vector<16x256xf32>,
    %c0_90 = arith.constant 0 : index
    %c0_91 = arith.constant 0 : index
    %121 = vector.load %arg7[%c0_90, %c0_91] : memref<8x144xf32, #tpu.memory_space<vmem>>, vector<8x144xf32>
    %c0_92 = arith.constant 0 : index
    %c0_93 = arith.constant 0 : index
    %122 = vector.load %arg12[%c0_92, %c0_93] : memref<144x256xf32, #tpu.memory_space<vmem>>, vector<144x256xf32>
    %cst_94 = arith.constant dense<0.000000e+00> : vector<8x256xf32>
    %123 = tpu.matmul %121, %122, %cst_94 {dimension_numbers = #tpu.dot_dimension_numbers<[1], [0], [0], [1], [0, 0, 1, 1], [], []>} : vector<8x144xf32>, vector<144x256xf32>, vector<8x256xf32> -> vector<8x256xf32>
    %c0_95 = arith.constant 0 : index
    %c0_96 = arith.constant 0 : index
    %124 = vector.load %arg8[%c0_95, %c0_96] : memref<8x1xf32, #tpu.memory_space<vmem>>, vector<8x1xf32>
    %125 = vector.broadcast %124 : vector<8x1xf32> to vector<8x256xf32>
    %126 = arith.addf %123, %125 : vector<8x256xf32>
    %cst_97 = arith.constant 0.000000e+00 : f32
    %127 = vector.broadcast %cst_97 : f32 to vector<8x256xf32>
    %128 = arith.maximumf %126, %127 : vector<8x256xf32>
    %c17_i32_98 = arith.constant 17 : i32
    %129 = tpu.dynamic_rotate %128 by %c17_i32_98 dim 1 : vector<8x256xf32>, i32 -> vector<8x256xf32>
    %c0_99 = arith.constant 0 : index
    %c0_100 = arith.constant 0 : index
    %130 = vector.load %arg4[%c0_99, %c0_100] : memref<9x256xf32, #tpu.memory_space<vmem>>, vector<1x256xf32>
    %131 = vector.broadcast %130 : vector<1x256xf32> to vector<8x256xf32>
    %132 = arith.mulf %129, %131 : vector<8x256xf32>
    %c0_101 = arith.constant 0 : index
    %c0_102 = arith.constant 0 : index
    %133 = vector.load %arg12[%c0_101, %c0_102] : memref<144x256xf32, #tpu.memory_space<vmem>>, vector<8x256xf32>
    tpu.vector_store %arg12[%c0_101, %c0_102], %132 {strides = array<i32>} : memref<144x256xf32, #tpu.memory_space<vmem>>, vector<8x256xf32>,
    %c16_i32_103 = arith.constant 16 : i32
    %134 = tpu.dynamic_rotate %128 by %c16_i32_103 dim 1 : vector<8x256xf32>, i32 -> vector<8x256xf32>
    %c1_104 = arith.constant 1 : index
    %c0_105 = arith.constant 0 : index
    %135 = vector.load %arg4[%c1_104, %c0_105] : memref<9x256xf32, #tpu.memory_space<vmem>>, vector<1x256xf32>
    %136 = vector.broadcast %135 : vector<1x256xf32> to vector<8x256xf32>
    %137 = arith.mulf %134, %136 : vector<8x256xf32>
    %c8_106 = arith.constant 8 : index
    %c0_107 = arith.constant 0 : index
    %138 = vector.load %arg12[%c8_106, %c0_107] : memref<144x256xf32, #tpu.memory_space<vmem>>, vector<8x256xf32>
    tpu.vector_store %arg12[%c8_106, %c0_107], %137 {strides = array<i32>} : memref<144x256xf32, #tpu.memory_space<vmem>>, vector<8x256xf32>,
    %c15_i32_108 = arith.constant 15 : i32
    %139 = tpu.dynamic_rotate %128 by %c15_i32_108 dim 1 : vector<8x256xf32>, i32 -> vector<8x256xf32>
    %c2_109 = arith.constant 2 : index
    %c0_110 = arith.constant 0 : index
    %140 = vector.load %arg4[%c2_109, %c0_110] : memref<9x256xf32, #tpu.memory_space<vmem>>, vector<1x256xf32>
    %141 = vector.broadcast %140 : vector<1x256xf32> to vector<8x256xf32>
    %142 = arith.mulf %139, %141 : vector<8x256xf32>
    %c16_111 = arith.constant 16 : index
    %c0_112 = arith.constant 0 : index
    %143 = vector.load %arg12[%c16_111, %c0_112] : memref<144x256xf32, #tpu.memory_space<vmem>>, vector<8x256xf32>
    tpu.vector_store %arg12[%c16_111, %c0_112], %142 {strides = array<i32>} : memref<144x256xf32, #tpu.memory_space<vmem>>, vector<8x256xf32>,
    %c1_i32_113 = arith.constant 1 : i32
    %144 = tpu.dynamic_rotate %128 by %c1_i32_113 dim 1 : vector<8x256xf32>, i32 -> vector<8x256xf32>
    %c3_114 = arith.constant 3 : index
    %c0_115 = arith.constant 0 : index
    %145 = vector.load %arg4[%c3_114, %c0_115] : memref<9x256xf32, #tpu.memory_space<vmem>>, vector<1x256xf32>
    %146 = vector.broadcast %145 : vector<1x256xf32> to vector<8x256xf32>
    %147 = arith.mulf %144, %146 : vector<8x256xf32>
    %c24_116 = arith.constant 24 : index
    %c0_117 = arith.constant 0 : index
    %148 = vector.load %arg12[%c24_116, %c0_117] : memref<144x256xf32, #tpu.memory_space<vmem>>, vector<8x256xf32>
    tpu.vector_store %arg12[%c24_116, %c0_117], %147 {strides = array<i32>} : memref<144x256xf32, #tpu.memory_space<vmem>>, vector<8x256xf32>,
    %c4_118 = arith.constant 4 : index
    %c0_119 = arith.constant 0 : index
    %149 = vector.load %arg4[%c4_118, %c0_119] : memref<9x256xf32, #tpu.memory_space<vmem>>, vector<1x256xf32>
    %150 = vector.broadcast %149 : vector<1x256xf32> to vector<8x256xf32>
    %151 = arith.mulf %128, %150 : vector<8x256xf32>
    %c32_120 = arith.constant 32 : index
    %c0_121 = arith.constant 0 : index
    %152 = vector.load %arg12[%c32_120, %c0_121] : memref<144x256xf32, #tpu.memory_space<vmem>>, vector<8x256xf32>
    tpu.vector_store %arg12[%c32_120, %c0_121], %151 {strides = array<i32>} : memref<144x256xf32, #tpu.memory_space<vmem>>, vector<8x256xf32>,
    %c255_i32_122 = arith.constant 255 : i32
    %153 = tpu.dynamic_rotate %128 by %c255_i32_122 dim 1 : vector<8x256xf32>, i32 -> vector<8x256xf32>
    %c5_123 = arith.constant 5 : index
    %c0_124 = arith.constant 0 : index
    %154 = vector.load %arg4[%c5_123, %c0_124] : memref<9x256xf32, #tpu.memory_space<vmem>>, vector<1x256xf32>
    %155 = vector.broadcast %154 : vector<1x256xf32> to vector<8x256xf32>
    %156 = arith.mulf %153, %155 : vector<8x256xf32>
    %c40_125 = arith.constant 40 : index
    %c0_126 = arith.constant 0 : index
    %157 = vector.load %arg12[%c40_125, %c0_126] : memref<144x256xf32, #tpu.memory_space<vmem>>, vector<8x256xf32>
    tpu.vector_store %arg12[%c40_125, %c0_126], %156 {strides = array<i32>} : memref<144x256xf32, #tpu.memory_space<vmem>>, vector<8x256xf32>,
    %c241_i32_127 = arith.constant 241 : i32
    %158 = tpu.dynamic_rotate %128 by %c241_i32_127 dim 1 : vector<8x256xf32>, i32 -> vector<8x256xf32>
    %c6_128 = arith.constant 6 : index
    %c0_129 = arith.constant 0 : index
    %159 = vector.load %arg4[%c6_128, %c0_129] : memref<9x256xf32, #tpu.memory_space<vmem>>, vector<1x256xf32>
    %160 = vector.broadcast %159 : vector<1x256xf32> to vector<8x256xf32>
    %161 = arith.mulf %158, %160 : vector<8x256xf32>
    %c48_130 = arith.constant 48 : index
    %c0_131 = arith.constant 0 : index
    %162 = vector.load %arg12[%c48_130, %c0_131] : memref<144x256xf32, #tpu.memory_space<vmem>>, vector<8x256xf32>
    tpu.vector_store %arg12[%c48_130, %c0_131], %161 {strides = array<i32>} : memref<144x256xf32, #tpu.memory_space<vmem>>, vector<8x256xf32>,
    %c240_i32_132 = arith.constant 240 : i32
    %163 = tpu.dynamic_rotate %128 by %c240_i32_132 dim 1 : vector<8x256xf32>, i32 -> vector<8x256xf32>
    %c7_133 = arith.constant 7 : index
    %c0_134 = arith.constant 0 : index
    %164 = vector.load %arg4[%c7_133, %c0_134] : memref<9x256xf32, #tpu.memory_space<vmem>>, vector<1x256xf32>
    %165 = vector.broadcast %164 : vector<1x256xf32> to vector<8x256xf32>
    %166 = arith.mulf %163, %165 : vector<8x256xf32>
    %c56_135 = arith.constant 56 : index
    %c0_136 = arith.constant 0 : index
    %167 = vector.load %arg12[%c56_135, %c0_136] : memref<144x256xf32, #tpu.memory_space<vmem>>, vector<8x256xf32>
    tpu.vector_store %arg12[%c56_135, %c0_136], %166 {strides = array<i32>} : memref<144x256xf32, #tpu.memory_space<vmem>>, vector<8x256xf32>,
    %c239_i32_137 = arith.constant 239 : i32
    %168 = tpu.dynamic_rotate %128 by %c239_i32_137 dim 1 : vector<8x256xf32>, i32 -> vector<8x256xf32>
    %c8_138 = arith.constant 8 : index
    %c0_139 = arith.constant 0 : index
    %169 = vector.load %arg4[%c8_138, %c0_139] : memref<9x256xf32, #tpu.memory_space<vmem>>, vector<1x256xf32>
    %170 = vector.broadcast %169 : vector<1x256xf32> to vector<8x256xf32>
    %171 = arith.mulf %168, %170 : vector<8x256xf32>
    %c64_140 = arith.constant 64 : index
    %c0_141 = arith.constant 0 : index
    %172 = vector.load %arg12[%c64_140, %c0_141] : memref<144x256xf32, #tpu.memory_space<vmem>>, vector<8x256xf32>
    tpu.vector_store %arg12[%c64_140, %c0_141], %171 {strides = array<i32>} : memref<144x256xf32, #tpu.memory_space<vmem>>, vector<8x256xf32>,
    %c0_142 = arith.constant 0 : index
    %c0_143 = arith.constant 0 : index
    %173 = vector.load %arg9[%c0_142, %c0_143] : memref<2x72xf32, #tpu.memory_space<vmem>>, vector<2x72xf32>
    %c0_144 = arith.constant 0 : index
    %c0_145 = arith.constant 0 : index
    %174 = vector.load %arg12[%c0_144, %c0_145] : memref<144x256xf32, #tpu.memory_space<vmem>>, vector<72x256xf32>
    %cst_146 = arith.constant dense<0.000000e+00> : vector<2x256xf32>
    %175 = tpu.matmul %173, %174, %cst_146 {dimension_numbers = #tpu.dot_dimension_numbers<[1], [0], [0], [1], [0, 0, 1, 1], [], []>} : vector<2x72xf32>, vector<72x256xf32>, vector<2x256xf32> -> vector<2x256xf32>
    %c0_147 = arith.constant 0 : index
    %c0_148 = arith.constant 0 : index
    %176 = vector.load %arg10[%c0_147, %c0_148] : memref<2x1xf32, #tpu.memory_space<vmem>>, vector<2x1xf32>
    %177 = vector.broadcast %176 : vector<2x1xf32> to vector<2x256xf32>
    %178 = arith.addf %175, %177 : vector<2x256xf32>
    %c0_149 = arith.constant 0 : index
    %c0_150 = arith.constant 0 : index
    %179 = vector.load %arg11[%c0_149, %c0_150] : memref<2x256xf32, #tpu.memory_space<vmem>>, vector<2x256xf32>
    tpu.vector_store %arg11[%c0_149, %c0_150], %178 {strides = array<i32>} : memref<2x256xf32, #tpu.memory_space<vmem>>, vector<2x256xf32>,
    return
  }
}

</mosaic_0001>

<llo_original>
// kernel: forward.1
$region0: #{forward.1}
  #allocation0 [shape = 'u32[]', space=smem, size = 0x4, offset = 0x4, fixed_abs, tag = 'smem constant byte address 0x4 - core index']
  #allocation1 [shape = 'u32[144,128]{1,0:T(1,128)}', space=vmem, size = 0x12000, scoped, tag = 'internal scratch']
  #allocation2 [shape = 'f32[144,256]{1,0:T(8,128)}', space=vmem, size = 0x24000, scoped, tag = 'scratch operand']
  %s0 = inlined_call_operand.vmem [shape: f32[2,8], index: 0, kind: input, shape index: {}]
  %s1 = inlined_call_operand.hbm [shape: f32[8,1024], index: 1, kind: input, shape index: {}]
  %s2 = inlined_call_operand.hbm [shape: f32[1,1024], index: 2, kind: input, shape index: {}]
  %s3 = inlined_call_operand.hbm [shape: f32[4,8,2], index: 3, kind: input, shape index: {}]
  %s4 = inlined_call_operand.hbm [shape: f32[9,256], index: 4, kind: input, shape index: {}]
  %s5 = inlined_call_operand.hbm [shape: f32[16,72], index: 5, kind: input, shape index: {}]
  %s6 = inlined_call_operand.hbm [shape: f32[16,1], index: 6, kind: input, shape index: {}]
  %s7 = inlined_call_operand.vmem [shape: f32[8,144], index: 7, kind: input, shape index: {}]
  %s8 = inlined_call_operand.vmem [shape: f32[8,1], index: 8, kind: input, shape index: {}]
  %s9 = inlined_call_operand.vmem [shape: f32[2,72], index: 9, kind: input, shape index: {}]
  %s10 = inlined_call_operand.vmem [shape: f32[2,1], index: 10, kind: input, shape index: {}]
  %s11 = inlined_call_operand.vmem [shape: f32[2,256], index: 11, kind: output, shape index: {}]
  %s12 = sld [smem:[#allocation0]]
  $region78: #{forward.1} parent=0
    _
  %s14 = ssub.s32 1, %s12
  %s15 = scalar_select 0, %s14, %s12
  $region1: #{forward.1} parent=0
    #allocation3 [shape = 'u8[32768]{0}', space=vmem, size = 0x8000, scoped, tag = 'input window, operand 1, single buffered']
    #allocation4 [shape = 's32[1]{0}', space=sflag, size = 0x4, scoped, tag = 'scoped memory for forward.1']
    #allocation5 [shape = 'u8[4096]{0}', space=vmem, size = 0x1000, scoped, tag = 'input window, operand 2, single buffered']
    #allocation6 [shape = 's32[1]{0}', space=sflag, size = 0x4, scoped, tag = 'scoped memory for forward.1']
    #allocation7 [shape = 'u8[16384]{0}', space=vmem, size = 0x4000, scoped, tag = 'input window, operand 3, single buffered']
    #allocation8 [shape = 'u8[16384]{0}', space=vmem, size = 0x4000, scoped, tag = 'input window, operand 4, single buffered']
    #allocation9 [shape = 's32[1]{0}', space=sflag, size = 0x4, scoped, tag = 'scoped memory for forward.1']
    #allocation10 [shape = 'u8[8192]{0}', space=vmem, size = 0x2000, scoped, tag = 'input window, operand 5, single buffered']
    #allocation11 [shape = 'u8[8192]{0}', space=vmem, size = 0x2000, scoped, tag = 'input window, operand 6, single buffered']
    #allocation12 [shape = 's32[1]{0}', space=sflag, size = 0x4, scoped, tag = 'scoped memory for forward.1']
    %16 = vsyncpa [#allocation4], 0
    %17 = vsyncpa [#allocation6], 0
    %18 = vsyncpa [#allocation9], 0
    %19 = vsyncpa [#allocation12], 0
    // Predicated region
    $region2: #{forward.1} parent=1 // pred_check
      _
    $region3: #{forward.1} parent=1 // pred_check_branch
      %21 = sbr.rel (0) target = $region5
    $region4: #{forward.1} parent=1 // pred_region
      _
    $region5: #{forward.1} parent=1 // pred_fallthru
      _
    // Predicated region
    $region6: #{forward.1} parent=1 // pred_check
      _
    $region7: #{forward.1} parent=1 // pred_check_branch
      %23 = sbr.rel (0) target = $region9
    $region8: #{forward.1} parent=1 // pred_region
      %s25 = ssub.s32 1024, 1024
      %26 = vsyncadd [#allocation4], %s25
      %s28 = sshll.u32 [#allocation3], 4
      %s29 = int_to_ptr.vmem [resolvable:$true] %s28
      %31 = dma.hbm_to_vmem [thread:$0]  %s1, 1024, %s29, [#allocation4]
    $region9: #{forward.1} parent=1 // pred_fallthru
      _
    // Predicated region
    $region10: #{forward.1} parent=1 // pred_check
      _
    $region11: #{forward.1} parent=1 // pred_check_branch
      %33 = sbr.rel (0) target = $region13
    $region12: #{forward.1} parent=1 // pred_region
      %s35 = ssub.s32 128, 128
      %36 = vsyncadd [#allocation6], %s35
      %s38 = sshll.u32 [#allocation5], 4
      %s39 = int_to_ptr.vmem [resolvable:$true] %s38
      %41 = dma.hbm_to_vmem [thread:$0]  %s2, 128, %s39, [#allocation6]
    $region13: #{forward.1} parent=1 // pred_fallthru
      _
    // Predicated region
    $region14: #{forward.1} parent=1 // pred_check
      _
    $region15: #{forward.1} parent=1 // pred_check_branch
      %43 = sbr.rel (0) target = $region17
    $region16: #{forward.1} parent=1 // pred_region
      %s45 = ssub.s32 512, 512
      %46 = vsyncadd [#allocation6], %s45
      %s47 = sshll.u32 [#allocation7], 4
      %s48 = int_to_ptr.vmem [resolvable:$true] %s47
      %53 = dma.hbm_to_vmem [thread:$0]  %s3, 512, %s48, [#allocation6], 128, 128, 8
    $region17: #{forward.1} parent=1 // pred_fallthru
      _
    // Predicated region
    $region18: #{forward.1} parent=1 // pred_check
      _
    $region19: #{forward.1} parent=1 // pred_check_branch
      %55 = sbr.rel (0) target = $region21
    $region20: #{forward.1} parent=1 // pred_region
      %s57 = ssub.s32 512, 512
      %58 = vsyncadd [#allocation9], %s57
      %s59 = sshll.u32 [#allocation8], 4
      %s60 = int_to_ptr.vmem [resolvable:$true] %s59
      %65 = dma.hbm_to_vmem [thread:$0]  %s4, 512, %s60, [#allocation9], 256, 256, 16
    $region21: #{forward.1} parent=1 // pred_fallthru
      _
    // Predicated region
    $region22: #{forward.1} parent=1 // pred_check
      _
    $region23: #{forward.1} parent=1 // pred_check_branch
      %67 = sbr.rel (0) target = $region25
    $region24: #{forward.1} parent=1 // pred_region
      %s69 = ssub.s32 256, 256
      %70 = vsyncadd [#allocation9], %s69
      %s71 = sshll.u32 [#allocation10], 4
      %s72 = int_to_ptr.vmem [resolvable:$true] %s71
      %77 = dma.hbm_to_vmem [thread:$0]  %s5, 256, %s72, [#allocation9], 128, 128, 8
    $region25: #{forward.1} parent=1 // pred_fallthru
      _
    // Predicated region
    $region26: #{forward.1} parent=1 // pred_check
      _
    $region27: #{forward.1} parent=1 // pred_check_branch
      %79 = sbr.rel (0) target = $region29
    $region28: #{forward.1} parent=1 // pred_region
      %s81 = ssub.s32 256, 256
      %82 = vsyncadd [#allocation12], %s81
      %s83 = sshll.u32 [#allocation11], 4
      %s84 = int_to_ptr.vmem [resolvable:$true] %s83
      %89 = dma.hbm_to_vmem [thread:$0]  %s6, 256, %s84, [#allocation12], 128, 128, 8
    $region29: #{forward.1} parent=1 // pred_fallthru
      _
    // Predicated region
    $region30: #{forward.1} parent=1 // pred_check
      _
    $region31: #{forward.1} parent=1 // pred_check_branch
      %91 = sbr.rel (0) target = $region33
    $region32: #{forward.1} parent=1 // pred_region
      _
    $region33: #{forward.1} parent=1 // pred_fallthru
      _
    // Predicated region
    $region34: #{forward.1} parent=1 // pred_check
      _
    $region35: #{forward.1} parent=1 // pred_check_branch
      %93 = sbr.rel (0) target = $region37
    $region36: #{forward.1} parent=1 // pred_region
      _
    $region37: #{forward.1} parent=1 // pred_fallthru
      _
    // Predicated region
    $region38: #{forward.1} parent=1 // pred_check
      _
    $region39: #{forward.1} parent=1 // pred_check_branch
      %95 = sbr.rel (0) target = $region41
    $region40: #{forward.1} parent=1 // pred_region
      _
    $region41: #{forward.1} parent=1 // pred_fallthru
      _
    // Predicated region
    $region42: #{forward.1} parent=1 // pred_check
      _
    $region43: #{forward.1} parent=1 // pred_check_branch
      %97 = sbr.rel (0) target = $region45
    $region44: #{forward.1} parent=1 // pred_region
      _
    $region45: #{forward.1} parent=1 // pred_fallthru
      _
    // Predicated region
    $region46: #{forward.1} parent=1 // pred_check
      _
    $region47: #{forward.1} parent=1 // pred_check_branch
      %99 = sbr.rel (0) target = $region49
    $region48: #{forward.1} parent=1 // pred_region
      %100 = dma.done [#allocation4], 1024
    $region49: #{forward.1} parent=1 // pred_fallthru
      _
    // Predicated region
    $region50: #{forward.1} parent=1 // pred_check
      _
    $region51: #{forward.1} parent=1 // pred_check_branch
      %102 = sbr.rel (0) target = $region53
    $region52: #{forward.1} parent=1 // pred_region
      %103 = dma.done [#allocation6], 128
    $region53: #{forward.1} parent=1 // pred_fallthru
      _
    // Predicated region
    $region54: #{forward.1} parent=1 // pred_check
      _
    $region55: #{forward.1} parent=1 // pred_check_branch
      %105 = sbr.rel (0) target = $region57
    $region56: #{forward.1} parent=1 // pred_region
      %106 = dma.done [#allocation6], 512
    $region57: #{forward.1} parent=1 // pred_fallthru
      _
    // Predicated region
    $region58: #{forward.1} parent=1 // pred_check
      _
    $region59: #{forward.1} parent=1 // pred_check_branch
      %108 = sbr.rel (0) target = $region61
    $region60: #{forward.1} parent=1 // pred_region
      %109 = dma.done [#allocation9], 512
    $region61: #{forward.1} parent=1 // pred_fallthru
      _
    // Predicated region
    $region62: #{forward.1} parent=1 // pred_check
      _
    $region63: #{forward.1} parent=1 // pred_check_branch
      %111 = sbr.rel (0) target = $region65
    $region64: #{forward.1} parent=1 // pred_region
      %112 = dma.done [#allocation9], 256
    $region65: #{forward.1} parent=1 // pred_fallthru
      _
    // Predicated region
    $region66: #{forward.1} parent=1 // pred_check
      _
    $region67: #{forward.1} parent=1 // pred_check_branch
      %114 = sbr.rel (0) target = $region69
    $region68: #{forward.1} parent=1 // pred_region
      %115 = dma.done [#allocation12], 256
    $region69: #{forward.1} parent=1 // pred_fallthru
      _
    %v116 = vld [vmem:[%s0] sm:$0x3]
    %v117 = vld [vmem:[#allocation3] sm:$0xff]
    %v118 = vld [vmem:[#allocation3 + $0x8] sm:$0xff]
    %v119 = vld [vmem:[#allocation3 + $0x10] sm:$0xff]
    %v120 = vld [vmem:[#allocation3 + $0x18] sm:$0xff]
    %v121 = vld [vmem:[#allocation3 + $0x20] sm:$0xff]
    %v122 = vld [vmem:[#allocation3 + $0x28] sm:$0xff]
    %v123 = vld [vmem:[#allocation3 + $0x30] sm:$0xff]
    %v124 = vld [vmem:[#allocation3 + $0x38] sm:$0xff]
    %v125 = vld [vmem:[#allocation5] sm:$0xff]
    %v127 = vlaneseq
    %v128 = vshrl.u32 %v127, 7
    %v129 = vsub.s32 0, %v128
    %v130 = vrot.slane %v125, %v129
    %v131 = vlaneseq
    %v132 = vshrl.u32 %v131, 7
    %v133 = vsub.s32 1, %v132
    %v134 = vrot.slane %v125, %v133
    %v135 = vlaneseq
    %v136 = vshrl.u32 %v135, 7
    %v137 = vsub.s32 2, %v136
    %v138 = vrot.slane %v125, %v137
    %v139 = vlaneseq
    %v140 = vshrl.u32 %v139, 7
    %v141 = vsub.s32 3, %v140
    %v142 = vrot.slane %v125, %v141
    %v143 = vlaneseq
    %v144 = vshrl.u32 %v143, 7
    %v145 = vsub.s32 4, %v144
    %v146 = vrot.slane %v125, %v145
    %v147 = vlaneseq
    %v148 = vshrl.u32 %v147, 7
    %v149 = vsub.s32 5, %v148
    %v150 = vrot.slane %v125, %v149
    %v151 = vlaneseq
    %v152 = vshrl.u32 %v151, 7
    %v153 = vsub.s32 6, %v152
    %v154 = vrot.slane %v125, %v153
    %v155 = vlaneseq
    %v156 = vshrl.u32 %v155, 7
    %v157 = vsub.s32 7, %v156
    %v158 = vrot.slane %v125, %v157
    %vm167 = vcmask 64512
    %v169 = vsel %vm167, %v116, 0
    %171 = vmatprep.subr.mxu0 %v118
    %172 = vmatpush1.msra.mxu0 %v117
    %173 = vmatprep.subr.mxu0 0.0
    %174 = vmatpush1.msra.mxu0 0.0
    %175 = vmatprep.subr.mxu0 0.0
    %176 = vmatpush1.msra.mxu0 0.0
    %177 = vmatprep.subr.mxu0 0.0
    %178 = vmatpush1.msra.mxu0 0.0
    %179 = vmatprep.subr.mxu0 0.0
    %180 = vmatpush1.msra.mxu0 0.0
    %181 = vmatprep.subr.mxu0 0.0
    %182 = vmatpush1.msra.mxu0 0.0
    %183 = vmatprep.subr.mxu0 0.0
    %184 = vmatpush1.msra.mxu0 0.0
    %185 = vmatprep.subr.mxu0 0.0
    %186 = vmatpush1.msra.mxu0 0.0
    %187 = vmatprep.subr.mxu0 0.0
    %188 = vmatpush1.msra.mxu0 0.0
    %189 = vmatprep.subr.mxu0 0.0
    %190 = vmatpush1.msra.mxu0 0.0
    %191 = vmatprep.subr.mxu0 0.0
    %192 = vmatpush1.msra.mxu0 0.0
    %193 = vmatprep.subr.mxu0 0.0
    %194 = vmatpush1.msra.mxu0 0.0
    %195 = vmatprep.subr.mxu0 0.0
    %196 = vmatpush1.msra.mxu0 0.0
    %197 = vmatprep.subr.mxu0 0.0
    %198 = vmatpush1.msra.mxu0 0.0
    %199 = vmatprep.subr.mxu0 0.0
    %200 = vmatpush1.msra.mxu0 0.0
    %201 = vmatprep.subr.mxu0 0.0
    %202 = vmatpush1.msra.mxu0 0.0
    %203 = vmatprep.subr.mxu0 0.0
    %204 = vmatpush1.msra.mxu0 0.0
    %205 = vmatprep.subr.mxu0 0.0
    %206 = vmatpush1.msra.mxu0 0.0
    %207 = vmatprep.subr.mxu0 0.0
    %208 = vmatpush1.msra.mxu0 0.0
    %209 = vmatprep.subr.mxu0 0.0
    %210 = vmatpush1.msra.mxu0 0.0
    %211 = vmatprep.subr.mxu0 0.0
    %212 = vmatpush1.msra.mxu0 0.0
    %213 = vmatprep.subr.mxu0 0.0
    %214 = vmatpush1.msra.mxu0 0.0
    %215 = vmatprep.subr.mxu0 0.0
    %216 = vmatpush1.msra.mxu0 0.0
    %217 = vmatprep.subr.mxu0 0.0
    %218 = vmatpush1.msra.mxu0 0.0
    %219 = vmatprep.subr.mxu0 0.0
    %220 = vmatpush1.msra.mxu0 0.0
    %221 = vmatprep.subr.mxu0 0.0
    %222 = vmatpush1.msra.mxu0 0.0
    %223 = vmatprep.subr.mxu0 0.0
    %224 = vmatpush1.msra.mxu0 0.0
    %225 = vmatprep.subr.mxu0 0.0
    %226 = vmatpush1.msra.mxu0 0.0
    %227 = vmatprep.subr.mxu0 0.0
    %228 = vmatpush1.msra.mxu0 0.0
    %229 = vmatprep.subr.mxu0 0.0
    %230 = vmatpush1.msra.mxu0 0.0
    %231 = vmatprep.subr.mxu0 0.0
    %232 = vmatpush1.msra.mxu0 0.0
    %233 = vmatprep.subr.mxu0 0.0
    %234 = vmatpush1.msra.mxu0 0.0
    %235 = vmatprep.mubr.f32.mxu0 0.0
    %236 = vmatmul.mubr.f32.gmra.mrb[0].mxu0 %v169
    %v237 = vpop.f32.mrb[0].mxu0
    %v238 = vadd.f32 %v130, %v237
    %v239 = vpop.f32.mrb[0].mxu0
    %v240 = vadd.f32 %v134, %v239
    %241 = vdwg.mxu0
    %242 = vmatprep.subr.mxu0 %v120
    %243 = vmatpush1.msra.mxu0 %v119
    %244 = vmatprep.subr.mxu0 0.0
    %245 = vmatpush1.msra.mxu0 0.0
    %246 = vmatprep.subr.mxu0 0.0
    %247 = vmatpush1.msra.mxu0 0.0
    %248 = vmatprep.subr.mxu0 0.0
    %249 = vmatpush1.msra.mxu0 0.0
    %250 = vmatprep.subr.mxu0 0.0
    %251 = vmatpush1.msra.mxu0 0.0
    %252 = vmatprep.subr.mxu0 0.0
    %253 = vmatpush1.msra.mxu0 0.0
    %254 = vmatprep.subr.mxu0 0.0
    %255 = vmatpush1.msra.mxu0 0.0
    %256 = vmatprep.subr.mxu0 0.0
    %257 = vmatpush1.msra.mxu0 0.0
    %258 = vmatprep.subr.mxu0 0.0
    %259 = vmatpush1.msra.mxu0 0.0
    %260 = vmatprep.subr.mxu0 0.0
    %261 = vmatpush1.msra.mxu0 0.0
    %262 = vmatprep.subr.mxu0 0.0
    %263 = vmatpush1.msra.mxu0 0.0
    %264 = vmatprep.subr.mxu0 0.0
    %265 = vmatpush1.msra.mxu0 0.0
    %266 = vmatprep.subr.mxu0 0.0
    %267 = vmatpush1.msra.mxu0 0.0
    %268 = vmatprep.subr.mxu0 0.0
    %269 = vmatpush1.msra.mxu0 0.0
    %270 = vmatprep.subr.mxu0 0.0
    %271 = vmatpush1.msra.mxu0 0.0
    %272 = vmatprep.subr.mxu0 0.0
    %273 = vmatpush1.msra.mxu0 0.0
    %274 = vmatprep.subr.mxu0 0.0
    %275 = vmatpush1.msra.mxu0 0.0
    %276 = vmatprep.subr.mxu0 0.0
    %277 = vmatpush1.msra.mxu0 0.0
    %278 = vmatprep.subr.mxu0 0.0
    %279 = vmatpush1.msra.mxu0 0.0
    %280 = vmatprep.subr.mxu0 0.0
    %281 = vmatpush1.msra.mxu0 0.0
    %282 = vmatprep.subr.mxu0 0.0
    %283 = vmatpush1.msra.mxu0 0.0
    %284 = vmatprep.subr.mxu0 0.0
    %285 = vmatpush1.msra.mxu0 0.0
    %286 = vmatprep.subr.mxu0 0.0
    %287 = vmatpush1.msra.mxu0 0.0
    %288 = vmatprep.subr.mxu0 0.0
    %289 = vmatpush1.msra.mxu0 0.0
    %290 = vmatprep.subr.mxu0 0.0
    %291 = vmatpush1.msra.mxu0 0.0
    %292 = vmatprep.subr.mxu0 0.0
    %293 = vmatpush1.msra.mxu0 0.0
    %294 = vmatprep.subr.mxu0 0.0
    %295 = vmatpush1.msra.mxu0 0.0
    %296 = vmatprep.subr.mxu0 0.0
    %297 = vmatpush1.msra.mxu0 0.0
    %298 = vmatprep.subr.mxu0 0.0
    %299 = vmatpush1.msra.mxu0 0.0
    %300 = vmatprep.subr.mxu0 0.0
    %301 = vmatpush1.msra.mxu0 0.0
    %302 = vmatprep.subr.mxu0 0.0
    %303 = vmatpush1.msra.mxu0 0.0
    %304 = vmatprep.subr.mxu0 0.0
    %305 = vmatpush1.msra.mxu0 0.0
    %306 = vmatprep.mubr.f32.mxu0 0.0
    %307 = vmatmul.mubr.f32.gmra.mrb[0].mxu0 %v169
    %v308 = vpop.f32.mrb[0].mxu0
    %v309 = vadd.f32 %v138, %v308
    %v310 = vpop.f32.mrb[0].mxu0
    %v311 = vadd.f32 %v142, %v310
    %312 = vdwg.mxu0
    %313 = vmatprep.subr.mxu0 %v122
    %314 = vmatpush1.msra.mxu0 %v121
    %315 = vmatprep.subr.mxu0 0.0
    %316 = vmatpush1.msra.mxu0 0.0
    %317 = vmatprep.subr.mxu0 0.0
    %318 = vmatpush1.msra.mxu0 0.0
    %319 = vmatprep.subr.mxu0 0.0
    %320 = vmatpush1.msra.mxu0 0.0
    %321 = vmatprep.subr.mxu0 0.0
    %322 = vmatpush1.msra.mxu0 0.0
    %323 = vmatprep.subr.mxu0 0.0
    %324 = vmatpush1.msra.mxu0 0.0
    %325 = vmatprep.subr.mxu0 0.0
    %326 = vmatpush1.msra.mxu0 0.0
    %327 = vmatprep.subr.mxu0 0.0
    %328 = vmatpush1.msra.mxu0 0.0
    %329 = vmatprep.subr.mxu0 0.0
    %330 = vmatpush1.msra.mxu0 0.0
    %331 = vmatprep.subr.mxu0 0.0
    %332 = vmatpush1.msra.mxu0 0.0
    %333 = vmatprep.subr.mxu0 0.0
    %334 = vmatpush1.msra.mxu0 0.0
    %335 = vmatprep.subr.mxu0 0.0
    %336 = vmatpush1.msra.mxu0 0.0
    %337 = vmatprep.subr.mxu0 0.0
    %338 = vmatpush1.msra.mxu0 0.0
    %339 = vmatprep.subr.mxu0 0.0
    %340 = vmatpush1.msra.mxu0 0.0
    %341 = vmatprep.subr.mxu0 0.0
    %342 = vmatpush1.msra.mxu0 0.0
    %343 = vmatprep.subr.mxu0 0.0
    %344 = vmatpush1.msra.mxu0 0.0
    %345 = vmatprep.subr.mxu0 0.0
    %346 = vmatpush1.msra.mxu0 0.0
    %347 = vmatprep.subr.mxu0 0.0
    %348 = vmatpush1.msra.mxu0 0.0
    %349 = vmatprep.subr.mxu0 0.0
    %350 = vmatpush1.msra.mxu0 0.0
    %351 = vmatprep.subr.mxu0 0.0
    %352 = vmatpush1.msra.mxu0 0.0
    %353 = vmatprep.subr.mxu0 0.0
    %354 = vmatpush1.msra.mxu0 0.0
    %355 = vmatprep.subr.mxu0 0.0
    %356 = vmatpush1.msra.mxu0 0.0
    %357 = vmatprep.subr.mxu0 0.0
    %358 = vmatpush1.msra.mxu0 0.0
    %359 = vmatprep.subr.mxu0 0.0
    %360 = vmatpush1.msra.mxu0 0.0
    %361 = vmatprep.subr.mxu0 0.0
    %362 = vmatpush1.msra.mxu0 0.0
    %363 = vmatprep.subr.mxu0 0.0
    %364 = vmatpush1.msra.mxu0 0.0
    %365 = vmatprep.subr.mxu0 0.0
    %366 = vmatpush1.msra.mxu0 0.0
    %367 = vmatprep.subr.mxu0 0.0
    %368 = vmatpush1.msra.mxu0 0.0
    %369 = vmatprep.subr.mxu0 0.0
    %370 = vmatpush1.msra.mxu0 0.0
    %371 = vmatprep.subr.mxu0 0.0
    %372 = vmatpush1.msra.mxu0 0.0
    %373 = vmatprep.subr.mxu0 0.0
    %374 = vmatpush1.msra.mxu0 0.0
    %375 = vmatprep.subr.mxu0 0.0
    %376 = vmatpush1.msra.mxu0 0.0
    %377 = vmatprep.mubr.f32.mxu0 0.0
    %378 = vmatmul.mubr.f32.gmra.mrb[0].mxu0 %v169
    %v379 = vpop.f32.mrb[0].mxu0
    %v380 = vadd.f32 %v146, %v379
    %v381 = vpop.f32.mrb[0].mxu0
    %v382 = vadd.f32 %v150, %v381
    %383 = vdwg.mxu0
    %384 = vmatprep.subr.mxu0 %v124
    %385 = vmatpush1.msra.mxu0 %v123
    %386 = vmatprep.subr.mxu0 0.0
    %387 = vmatpush1.msra.mxu0 0.0
    %388 = vmatprep.subr.mxu0 0.0
    %389 = vmatpush1.msra.mxu0 0.0
    %390 = vmatprep.subr.mxu0 0.0
    %391 = vmatpush1.msra.mxu0 0.0
    %392 = vmatprep.subr.mxu0 0.0
    %393 = vmatpush1.msra.mxu0 0.0
    %394 = vmatprep.subr.mxu0 0.0
    %395 = vmatpush1.msra.mxu0 0.0
    %396 = vmatprep.subr.mxu0 0.0
    %397 = vmatpush1.msra.mxu0 0.0
    %398 = vmatprep.subr.mxu0 0.0
    %399 = vmatpush1.msra.mxu0 0.0
    %400 = vmatprep.subr.mxu0 0.0
    %401 = vmatpush1.msra.mxu0 0.0
    %402 = vmatprep.subr.mxu0 0.0
    %403 = vmatpush1.msra.mxu0 0.0
    %404 = vmatprep.subr.mxu0 0.0
    %405 = vmatpush1.msra.mxu0 0.0
    %406 = vmatprep.subr.mxu0 0.0
    %407 = vmatpush1.msra.mxu0 0.0
    %408 = vmatprep.subr.mxu0 0.0
    %409 = vmatpush1.msra.mxu0 0.0
    %410 = vmatprep.subr.mxu0 0.0
    %411 = vmatpush1.msra.mxu0 0.0
    %412 = vmatprep.subr.mxu0 0.0
    %413 = vmatpush1.msra.mxu0 0.0
    %414 = vmatprep.subr.mxu0 0.0
    %415 = vmatpush1.msra.mxu0 0.0
    %416 = vmatprep.subr.mxu0 0.0
    %417 = vmatpush1.msra.mxu0 0.0
    %418 = vmatprep.subr.mxu0 0.0
    %419 = vmatpush1.msra.mxu0 0.0
    %420 = vmatprep.subr.mxu0 0.0
    %421 = vmatpush1.msra.mxu0 0.0
    %422 = vmatprep.subr.mxu0 0.0
    %423 = vmatpush1.msra.mxu0 0.0
    %424 = vmatprep.subr.mxu0 0.0
    %425 = vmatpush1.msra.mxu0 0.0
    %426 = vmatprep.subr.mxu0 0.0
    %427 = vmatpush1.msra.mxu0 0.0
    %428 = vmatprep.subr.mxu0 0.0
    %429 = vmatpush1.msra.mxu0 0.0
    %430 = vmatprep.subr.mxu0 0.0
    %431 = vmatpush1.msra.mxu0 0.0
    %432 = vmatprep.subr.mxu0 0.0
    %433 = vmatpush1.msra.mxu0 0.0
    %434 = vmatprep.subr.mxu0 0.0
    %435 = vmatpush1.msra.mxu0 0.0
    %436 = vmatprep.subr.mxu0 0.0
    %437 = vmatpush1.msra.mxu0 0.0
    %438 = vmatprep.subr.mxu0 0.0
    %439 = vmatpush1.msra.mxu0 0.0
    %440 = vmatprep.subr.mxu0 0.0
    %441 = vmatpush1.msra.mxu0 0.0
    %442 = vmatprep.subr.mxu0 0.0
    %443 = vmatpush1.msra.mxu0 0.0
    %444 = vmatprep.subr.mxu0 0.0
    %445 = vmatpush1.msra.mxu0 0.0
    %446 = vmatprep.subr.mxu0 0.0
    %447 = vmatpush1.msra.mxu0 0.0
    %448 = vmatprep.mubr.f32.mxu0 0.0
    %449 = vmatmul.mubr.f32.gmra.mrb[0].mxu0 %v169
    %v450 = vpop.f32.mrb[0].mxu0
    %v451 = vadd.f32 %v154, %v450
    %v452 = vpop.f32.mrb[0].mxu0
    %v453 = vadd.f32 %v158, %v452
    %454 = vdwg.mxu0
    %v455 = vld [vmem:[#allocation7] sm:$0xff]
    %s456 = scalar_lea.vmem [#allocation7], 8
    %v457 = vld [vmem:[%s456] sm:$0xff]
    %vm458 = vcmask 15360
    %v460 = vsel %vm458, %v457, 0
    %vm462 = vcmask 1041408
    %v464 = vsel %vm462, %v309, 0
    %v467 = vsel %vm462, %v311, 0
    %469 = vmatprep.subr.mxu0 %v467
    %470 = vmatpush1.msra.mxu0 %v464
    %471 = vmatprep.subr.mxu0 0.0
    %472 = vmatpush1.msra.mxu0 0.0
    %473 = vmatprep.subr.mxu0 0.0
    %474 = vmatpush1.msra.mxu0 0.0
    %475 = vmatprep.subr.mxu0 0.0
    %476 = vmatpush1.msra.mxu0 0.0
    %477 = vmatprep.subr.mxu0 0.0
    %478 = vmatpush1.msra.mxu0 0.0
    %479 = vmatprep.subr.mxu0 0.0
    %480 = vmatpush1.msra.mxu0 0.0
    %481 = vmatprep.subr.mxu0 0.0
    %482 = vmatpush1.msra.mxu0 0.0
    %483 = vmatprep.subr.mxu0 0.0
    %484 = vmatpush1.msra.mxu0 0.0
    %485 = vmatprep.subr.mxu0 0.0
    %486 = vmatpush1.msra.mxu0 0.0
    %487 = vmatprep.subr.mxu0 0.0
    %488 = vmatpush1.msra.mxu0 0.0
    %489 = vmatprep.subr.mxu0 0.0
    %490 = vmatpush1.msra.mxu0 0.0
    %491 = vmatprep.subr.mxu0 0.0
    %492 = vmatpush1.msra.mxu0 0.0
    %493 = vmatprep.subr.mxu0 0.0
    %494 = vmatpush1.msra.mxu0 0.0
    %495 = vmatprep.subr.mxu0 0.0
    %496 = vmatpush1.msra.mxu0 0.0
    %497 = vmatprep.subr.mxu0 0.0
    %498 = vmatpush1.msra.mxu0 0.0
    %499 = vmatprep.subr.mxu0 0.0
    %500 = vmatpush1.msra.mxu0 0.0
    %501 = vmatprep.subr.mxu0 0.0
    %502 = vmatpush1.msra.mxu0 0.0
    %503 = vmatprep.subr.mxu0 0.0
    %504 = vmatpush1.msra.mxu0 0.0
    %505 = vmatprep.subr.mxu0 0.0
    %506 = vmatpush1.msra.mxu0 0.0
    %507 = vmatprep.subr.mxu0 0.0
    %508 = vmatpush1.msra.mxu0 0.0
    %509 = vmatprep.subr.mxu0 0.0
    %510 = vmatpush1.msra.mxu0 0.0
    %511 = vmatprep.subr.mxu0 0.0
    %512 = vmatpush1.msra.mxu0 0.0
    %513 = vmatprep.subr.mxu0 0.0
    %514 = vmatpush1.msra.mxu0 0.0
    %515 = vmatprep.subr.mxu0 0.0
    %516 = vmatpush1.msra.mxu0 0.0
    %517 = vmatprep.subr.mxu0 0.0
    %518 = vmatpush1.msra.mxu0 0.0
    %519 = vmatprep.subr.mxu0 0.0
    %520 = vmatpush1.msra.mxu0 0.0
    %521 = vmatprep.subr.mxu0 0.0
    %522 = vmatpush1.msra.mxu0 0.0
    %523 = vmatprep.subr.mxu0 0.0
    %524 = vmatpush1.msra.mxu0 0.0
    %525 = vmatprep.subr.mxu0 0.0
    %526 = vmatpush1.msra.mxu0 0.0
    %527 = vmatprep.subr.mxu0 0.0
    %528 = vmatpush1.msra.mxu0 0.0
    %529 = vmatprep.subr.mxu0 0.0
    %530 = vmatpush1.msra.mxu0 0.0
    %531 = vmatprep.subr.mxu0 0.0
    %532 = vmatpush1.msra.mxu0 0.0
    %533 = vmatprep.mubr.f32.mxu0 0.0
    %534 = vmatmul.mubr.f32.gmra.mrb[0].mxu0 %v460
    %v535 = vpop.f32.mrb[0].mxu0
    %v536 = vadd.f32 0.0, %v535
    %v537 = vpop.f32.mrb[0].mxu0
    %v538 = vadd.f32 0.0, %v537
    %539 = vdwg.mxu0
    %v541 = vsel %vm458, %v455, 0
    %v544 = vsel %vm462, %v238, 0
    %v547 = vsel %vm462, %v240, 0
    %549 = vmatprep.subr.mxu0 %v547
    %550 = vmatpush1.msra.mxu0 %v544
    %551 = vmatprep.subr.mxu0 0.0
    %552 = vmatpush1.msra.mxu0 0.0
    %553 = vmatprep.subr.mxu0 0.0
    %554 = vmatpush1.msra.mxu0 0.0
    %555 = vmatprep.subr.mxu0 0.0
    %556 = vmatpush1.msra.mxu0 0.0
    %557 = vmatprep.subr.mxu0 0.0
    %558 = vmatpush1.msra.mxu0 0.0
    %559 = vmatprep.subr.mxu0 0.0
    %560 = vmatpush1.msra.mxu0 0.0
    %561 = vmatprep.subr.mxu0 0.0
    %562 = vmatpush1.msra.mxu0 0.0
    %563 = vmatprep.subr.mxu0 0.0
    %564 = vmatpush1.msra.mxu0 0.0
    %565 = vmatprep.subr.mxu0 0.0
    %566 = vmatpush1.msra.mxu0 0.0
    %567 = vmatprep.subr.mxu0 0.0
    %568 = vmatpush1.msra.mxu0 0.0
    %569 = vmatprep.subr.mxu0 0.0
    %570 = vmatpush1.msra.mxu0 0.0
    %571 = vmatprep.subr.mxu0 0.0
    %572 = vmatpush1.msra.mxu0 0.0
    %573 = vmatprep.subr.mxu0 0.0
    %574 = vmatpush1.msra.mxu0 0.0
    %575 = vmatprep.subr.mxu0 0.0
    %576 = vmatpush1.msra.mxu0 0.0
    %577 = vmatprep.subr.mxu0 0.0
    %578 = vmatpush1.msra.mxu0 0.0
    %579 = vmatprep.subr.mxu0 0.0
    %580 = vmatpush1.msra.mxu0 0.0
    %581 = vmatprep.subr.mxu0 0.0
    %582 = vmatpush1.msra.mxu0 0.0
    %583 = vmatprep.subr.mxu0 0.0
    %584 = vmatpush1.msra.mxu0 0.0
    %585 = vmatprep.subr.mxu0 0.0
    %586 = vmatpush1.msra.mxu0 0.0
    %587 = vmatprep.subr.mxu0 0.0
    %588 = vmatpush1.msra.mxu0 0.0
    %589 = vmatprep.subr.mxu0 0.0
    %590 = vmatpush1.msra.mxu0 0.0
    %591 = vmatprep.subr.mxu0 0.0
    %592 = vmatpush1.msra.mxu0 0.0
    %593 = vmatprep.subr.mxu0 0.0
    %594 = vmatpush1.msra.mxu0 0.0
    %595 = vmatprep.subr.mxu0 0.0
    %596 = vmatpush1.msra.mxu0 0.0
    %597 = vmatprep.subr.mxu0 0.0
    %598 = vmatpush1.msra.mxu0 0.0
    %599 = vmatprep.subr.mxu0 0.0
    %600 = vmatpush1.msra.mxu0 0.0
    %601 = vmatprep.subr.mxu0 0.0
    %602 = vmatpush1.msra.mxu0 0.0
    %603 = vmatprep.subr.mxu0 0.0
    %604 = vmatpush1.msra.mxu0 0.0
    %605 = vmatprep.subr.mxu0 0.0
    %606 = vmatpush1.msra.mxu0 0.0
    %607 = vmatprep.subr.mxu0 0.0
    %608 = vmatpush1.msra.mxu0 0.0
    %609 = vmatprep.subr.mxu0 0.0
    %610 = vmatpush1.msra.mxu0 0.0
    %611 = vmatprep.subr.mxu0 0.0
    %612 = vmatpush1.msra.mxu0 0.0
    %613 = vmatprep.mubr.f32.mxu0 0.0
    %614 = vmatmul.mubr.f32.gmra.mrb[0].mxu0 %v541
    %v615 = vpop.f32.mrb[0].mxu0
    %v616 = vadd.f32 %v536, %v615
    %v617 = vpop.f32.mrb[0].mxu0
    %v618 = vadd.f32 %v538, %v617
    %619 = vdwg.mxu0
    %s620 = scalar_lea.vmem [#allocation7], 16
    %v621 = vld [vmem:[%s620] sm:$0xff]
    %v623 = vsel %vm458, %v621, 0
    %v626 = vsel %vm462, %v380, 0
    %v629 = vsel %vm462, %v382, 0
    %631 = vmatprep.subr.mxu0 %v629
    %632 = vmatpush1.msra.mxu0 %v626
    %633 = vmatprep.subr.mxu0 0.0
    %634 = vmatpush1.msra.mxu0 0.0
    %635 = vmatprep.subr.mxu0 0.0
    %636 = vmatpush1.msra.mxu0 0.0
    %637 = vmatprep.subr.mxu0 0.0
    %638 = vmatpush1.msra.mxu0 0.0
    %639 = vmatprep.subr.mxu0 0.0
    %640 = vmatpush1.msra.mxu0 0.0
    %641 = vmatprep.subr.mxu0 0.0
    %642 = vmatpush1.msra.mxu0 0.0
    %643 = vmatprep.subr.mxu0 0.0
    %644 = vmatpush1.msra.mxu0 0.0
    %645 = vmatprep.subr.mxu0 0.0
    %646 = vmatpush1.msra.mxu0 0.0
    %647 = vmatprep.subr.mxu0 0.0
    %648 = vmatpush1.msra.mxu0 0.0
    %649 = vmatprep.subr.mxu0 0.0
    %650 = vmatpush1.msra.mxu0 0.0
    %651 = vmatprep.subr.mxu0 0.0
    %652 = vmatpush1.msra.mxu0 0.0
    %653 = vmatprep.subr.mxu0 0.0
    %654 = vmatpush1.msra.mxu0 0.0
    %655 = vmatprep.subr.mxu0 0.0
    %656 = vmatpush1.msra.mxu0 0.0
    %657 = vmatprep.subr.mxu0 0.0
    %658 = vmatpush1.msra.mxu0 0.0
    %659 = vmatprep.subr.mxu0 0.0
    %660 = vmatpush1.msra.mxu0 0.0
    %661 = vmatprep.subr.mxu0 0.0
    %662 = vmatpush1.msra.mxu0 0.0
    %663 = vmatprep.subr.mxu0 0.0
    %664 = vmatpush1.msra.mxu0 0.0
    %665 = vmatprep.subr.mxu0 0.0
    %666 = vmatpush1.msra.mxu0 0.0
    %667 = vmatprep.subr.mxu0 0.0
    %668 = vmatpush1.msra.mxu0 0.0
    %669 = vmatprep.subr.mxu0 0.0
    %670 = vmatpush1.msra.mxu0 0.0
    %671 = vmatprep.subr.mxu0 0.0
    %672 = vmatpush1.msra.mxu0 0.0
    %673 = vmatprep.subr.mxu0 0.0
    %674 = vmatpush1.msra.mxu0 0.0
    %675 = vmatprep.subr.mxu0 0.0
    %676 = vmatpush1.msra.mxu0 0.0
    %677 = vmatprep.subr.mxu0 0.0
    %678 = vmatpush1.msra.mxu0 0.0
    %679 = vmatprep.subr.mxu0 0.0
    %680 = vmatpush1.msra.mxu0 0.0
    %681 = vmatprep.subr.mxu0 0.0
    %682 = vmatpush1.msra.mxu0 0.0
    %683 = vmatprep.subr.mxu0 0.0
    %684 = vmatpush1.msra.mxu0 0.0
    %685 = vmatprep.subr.mxu0 0.0
    %686 = vmatpush1.msra.mxu0 0.0
    %687 = vmatprep.subr.mxu0 0.0
    %688 = vmatpush1.msra.mxu0 0.0
    %689 = vmatprep.subr.mxu0 0.0
    %690 = vmatpush1.msra.mxu0 0.0
    %691 = vmatprep.subr.mxu0 0.0
    %692 = vmatpush1.msra.mxu0 0.0
    %693 = vmatprep.subr.mxu0 0.0
    %694 = vmatpush1.msra.mxu0 0.0
    %695 = vmatprep.mubr.f32.mxu0 0.0
    %696 = vmatmul.mubr.f32.gmra.mrb[0].mxu0 %v623
    %v697 = vpop.f32.mrb[0].mxu0
    %v698 = vadd.f32 0.0, %v697
    %v699 = vpop.f32.mrb[0].mxu0
    %v700 = vadd.f32 0.0, %v699
    %701 = vdwg.mxu0
    %v702 = vadd.f32 %v616, %v698
    %v703 = vadd.f32 %v618, %v700
    %s704 = scalar_lea.vmem [#allocation7], 24
    %v705 = vld [vmem:[%s704] sm:$0xff]
    %v707 = vsel %vm458, %v705, 0
    %v710 = vsel %vm462, %v451, 0
    %v713 = vsel %vm462, %v453, 0
    %715 = vmatprep.subr.mxu0 %v713
    %716 = vmatpush1.msra.mxu0 %v710
    %717 = vmatprep.subr.mxu0 0.0
    %718 = vmatpush1.msra.mxu0 0.0
    %719 = vmatprep.subr.mxu0 0.0
    %720 = vmatpush1.msra.mxu0 0.0
    %721 = vmatprep.subr.mxu0 0.0
    %722 = vmatpush1.msra.mxu0 0.0
    %723 = vmatprep.subr.mxu0 0.0
    %724 = vmatpush1.msra.mxu0 0.0
    %725 = vmatprep.subr.mxu0 0.0
    %726 = vmatpush1.msra.mxu0 0.0
    %727 = vmatprep.subr.mxu0 0.0
    %728 = vmatpush1.msra.mxu0 0.0
    %729 = vmatprep.subr.mxu0 0.0
    %730 = vmatpush1.msra.mxu0 0.0
    %731 = vmatprep.subr.mxu0 0.0
    %732 = vmatpush1.msra.mxu0 0.0
    %733 = vmatprep.subr.mxu0 0.0
    %734 = vmatpush1.msra.mxu0 0.0
    %735 = vmatprep.subr.mxu0 0.0
    %736 = vmatpush1.msra.mxu0 0.0
    %737 = vmatprep.subr.mxu0 0.0
    %738 = vmatpush1.msra.mxu0 0.0
    %739 = vmatprep.subr.mxu0 0.0
    %740 = vmatpush1.msra.mxu0 0.0
    %741 = vmatprep.subr.mxu0 0.0
    %742 = vmatpush1.msra.mxu0 0.0
    %743 = vmatprep.subr.mxu0 0.0
    %744 = vmatpush1.msra.mxu0 0.0
    %745 = vmatprep.subr.mxu0 0.0
    %746 = vmatpush1.msra.mxu0 0.0
    %747 = vmatprep.subr.mxu0 0.0
    %748 = vmatpush1.msra.mxu0 0.0
    %749 = vmatprep.subr.mxu0 0.0
    %750 = vmatpush1.msra.mxu0 0.0
    %751 = vmatprep.subr.mxu0 0.0
    %752 = vmatpush1.msra.mxu0 0.0
    %753 = vmatprep.subr.mxu0 0.0
    %754 = vmatpush1.msra.mxu0 0.0
    %755 = vmatprep.subr.mxu0 0.0
    %756 = vmatpush1.msra.mxu0 0.0
    %757 = vmatprep.subr.mxu0 0.0
    %758 = vmatpush1.msra.mxu0 0.0
    %759 = vmatprep.subr.mxu0 0.0
    %760 = vmatpush1.msra.mxu0 0.0
    %761 = vmatprep.subr.mxu0 0.0
    %762 = vmatpush1.msra.mxu0 0.0
    %763 = vmatprep.subr.mxu0 0.0
    %764 = vmatpush1.msra.mxu0 0.0
    %765 = vmatprep.subr.mxu0 0.0
    %766 = vmatpush1.msra.mxu0 0.0
    %767 = vmatprep.subr.mxu0 0.0
    %768 = vmatpush1.msra.mxu0 0.0
    %769 = vmatprep.subr.mxu0 0.0
    %770 = vmatpush1.msra.mxu0 0.0
    %771 = vmatprep.subr.mxu0 0.0
    %772 = vmatpush1.msra.mxu0 0.0
    %773 = vmatprep.subr.mxu0 0.0
    %774 = vmatpush1.msra.mxu0 0.0
    %775 = vmatprep.subr.mxu0 0.0
    %776 = vmatpush1.msra.mxu0 0.0
    %777 = vmatprep.subr.mxu0 0.0
    %778 = vmatpush1.msra.mxu0 0.0
    %779 = vmatprep.mubr.f32.mxu0 0.0
    %780 = vmatmul.mubr.f32.gmra.mrb[0].mxu0 %v707
    %v781 = vpop.f32.mrb[0].mxu0
    %v782 = vadd.f32 0.0, %v781
    %v783 = vpop.f32.mrb[0].mxu0
    %v784 = vadd.f32 0.0, %v783
    %785 = vdwg.mxu0
    %v786 = vadd.f32 %v702, %v782
    %v787 = vadd.f32 %v703, %v784
    %788 = vrot.lane.b32.xlu0 %v786, 17
    %v789 = vpop.permute.xlu0 %788
    %790 = vrot.lane.b32.xlu0 %v787, 17
    %v791 = vpop.permute.xlu0 %790
    %v792 = vlaneseq
    %v793 = vand.u32 %v792, 127
    %vm794 = vcmp.lt.s32.totalorder %v793, 17
    %v795 = vsel %vm794, %v789, %v791
    %v796 = vsel %vm794, %v791, %v789
    %v797 = vld [vmem:[#allocation8] ss:$8 sm:$0x3]
    %v799 = vlaneseq
    %v800 = vshrl.u32 %v799, 7
    %v801 = vsub.s32 0, %v800
    %v802 = vrot.slane %v797, %v801
    %v803 = vlaneseq
    %v804 = vshrl.u32 %v803, 7
    %v805 = vsub.s32 1, %v804
    %v806 = vrot.slane %v797, %v805
    %v809 = vmul.f32 %v796, %v802
    %v810 = vmul.f32 %v795, %v806
    %811 = vst [vmem:[#allocation2] sm:$0xff] %v809
    %812 = vst [vmem:[#allocation2 + $0x8] sm:$0xff] %v810
    %813 = vrot.lane.b32.xlu0 %v786, 16
    %v814 = vpop.permute.xlu0 %813
    %815 = vrot.lane.b32.xlu0 %v787, 16
    %v816 = vpop.permute.xlu0 %815
    %vm817 = vcmp.lt.s32.totalorder %v793, 16
    %v818 = vsel %vm817, %v814, %v816
    %v819 = vsel %vm817, %v816, %v814
    %s820 = scalar_lea.vmem [#allocation8], 1
    %v821 = vld [vmem:[%s820] ss:$8 sm:$0x3]
    %v823 = vlaneseq
    %v824 = vshrl.u32 %v823, 7
    %v825 = vsub.s32 0, %v824
    %v826 = vrot.slane %v821, %v825
    %v827 = vlaneseq
    %v828 = vshrl.u32 %v827, 7
    %v829 = vsub.s32 1, %v828
    %v830 = vrot.slane %v821, %v829
    %v833 = vmul.f32 %v819, %v826
    %v834 = vmul.f32 %v818, %v830
    %835 = vst [vmem:[#allocation2 + $0x10] sm:$0xff] %v833
    %836 = vst [vmem:[#allocation2 + $0x18] sm:$0xff] %v834
    %837 = vrot.lane.b32.xlu0 %v786, 15
    %v838 = vpop.permute.xlu0 %837
    %839 = vrot.lane.b32.xlu0 %v787, 15
    %v840 = vpop.permute.xlu0 %839
    %vm841 = vcmp.lt.s32.totalorder %v793, 15
    %v842 = vsel %vm841, %v838, %v840
    %v843 = vsel %vm841, %v840, %v838
    %s844 = scalar_lea.vmem [#allocation8], 2
    %v845 = vld [vmem:[%s844] ss:$8 sm:$0x3]
    %v847 = vlaneseq
    %v848 = vshrl.u32 %v847, 7
    %v849 = vsub.s32 0, %v848
    %v850 = vrot.slane %v845, %v849
    %v851 = vlaneseq
    %v852 = vshrl.u32 %v851, 7
    %v853 = vsub.s32 1, %v852
    %v854 = vrot.slane %v845, %v853
    %v857 = vmul.f32 %v843, %v850
    %v858 = vmul.f32 %v842, %v854
    %859 = vst [vmem:[#allocation2 + $0x20] sm:$0xff] %v857
    %860 = vst [vmem:[#allocation2 + $0x28] sm:$0xff] %v858
    %861 = vrot.lane.b32.xlu0 %v786, 1
    %v862 = vpop.permute.xlu0 %861
    %863 = vrot.lane.b32.xlu0 %v787, 1
    %v864 = vpop.permute.xlu0 %863
    %vm865 = vcmp.lt.s32.totalorder %v793, 1
    %v866 = vsel %vm865, %v862, %v864
    %v867 = vsel %vm865, %v864, %v862
    %s868 = scalar_lea.vmem [#allocation8], 3
    %v869 = vld [vmem:[%s868] ss:$8 sm:$0x3]
    %v871 = vlaneseq
    %v872 = vshrl.u32 %v871, 7
    %v873 = vsub.s32 0, %v872
    %v874 = vrot.slane %v869, %v873
    %v875 = vlaneseq
    %v876 = vshrl.u32 %v875, 7
    %v877 = vsub.s32 1, %v876
    %v878 = vrot.slane %v869, %v877
    %v881 = vmul.f32 %v867, %v874
    %v882 = vmul.f32 %v866, %v878
    %883 = vst [vmem:[#allocation2 + $0x30] sm:$0xff] %v881
    %884 = vst [vmem:[#allocation2 + $0x38] sm:$0xff] %v882
    %s885 = scalar_lea.vmem [#allocation8], 4
    %v886 = vld [vmem:[%s885] ss:$8 sm:$0x3]
    %v888 = vlaneseq
    %v889 = vshrl.u32 %v888, 7
    %v890 = vsub.s32 0, %v889
    %v891 = vrot.slane %v886, %v890
    %v892 = vlaneseq
    %v893 = vshrl.u32 %v892, 7
    %v894 = vsub.s32 1, %v893
    %v895 = vrot.slane %v886, %v894
    %v898 = vmul.f32 %v786, %v891
    %v899 = vmul.f32 %v787, %v895
    %900 = vst [vmem:[#allocation2 + $0x40] sm:$0xff] %v898
    %901 = vst [vmem:[#allocation2 + $0x48] sm:$0xff] %v899
    %902 = vrot.lane.b32.xlu0 %v786, 127
    %v903 = vpop.permute.xlu0 %902
    %904 = vrot.lane.b32.xlu0 %v787, 127
    %v905 = vpop.permute.xlu0 %904
    %vm906 = vcmp.lt.s32.totalorder %v793, 127
    %v907 = vsel %vm906, %v903, %v905
    %v908 = vsel %vm906, %v905, %v903
    %s909 = scalar_lea.vmem [#allocation8], 5
    %v910 = vld [vmem:[%s909] ss:$8 sm:$0x3]
    %v912 = vlaneseq
    %v913 = vshrl.u32 %v912, 7
    %v914 = vsub.s32 0, %v913
    %v915 = vrot.slane %v910, %v914
    %v916 = vlaneseq
    %v917 = vshrl.u32 %v916, 7
    %v918 = vsub.s32 1, %v917
    %v919 = vrot.slane %v910, %v918
    %v922 = vmul.f32 %v907, %v915
    %v923 = vmul.f32 %v908, %v919
    %924 = vst [vmem:[#allocation2 + $0x50] sm:$0xff] %v922
    %925 = vst [vmem:[#allocation2 + $0x58] sm:$0xff] %v923
    %926 = vrot.lane.b32.xlu0 %v786, 113
    %v927 = vpop.permute.xlu0 %926
    %928 = vrot.lane.b32.xlu0 %v787, 113
    %v929 = vpop.permute.xlu0 %928
    %vm930 = vcmp.lt.s32.totalorder %v793, 113
    %v931 = vsel %vm930, %v927, %v929
    %v932 = vsel %vm930, %v929, %v927
    %s933 = scalar_lea.vmem [#allocation8], 6
    %v934 = vld [vmem:[%s933] ss:$8 sm:$0x3]
    %v936 = vlaneseq
    %v937 = vshrl.u32 %v936, 7
    %v938 = vsub.s32 0, %v937
    %v939 = vrot.slane %v934, %v938
    %v940 = vlaneseq
    %v941 = vshrl.u32 %v940, 7
    %v942 = vsub.s32 1, %v941
    %v943 = vrot.slane %v934, %v942
    %v946 = vmul.f32 %v931, %v939
    %v947 = vmul.f32 %v932, %v943
    %948 = vst [vmem:[#allocation2 + $0x60] sm:$0xff] %v946
    %949 = vst [vmem:[#allocation2 + $0x68] sm:$0xff] %v947
    %950 = vrot.lane.b32.xlu0 %v786, 112
    %v951 = vpop.permute.xlu0 %950
    %952 = vrot.lane.b32.xlu0 %v787, 112
    %v953 = vpop.permute.xlu0 %952
    %vm954 = vcmp.lt.s32.totalorder %v793, 112
    %v955 = vsel %vm954, %v951, %v953
    %v956 = vsel %vm954, %v953, %v951
    %s957 = scalar_lea.vmem [#allocation8], 7
    %v958 = vld [vmem:[%s957] ss:$8 sm:$0x3]
    %v960 = vlaneseq
    %v961 = vshrl.u32 %v960, 7
    %v962 = vsub.s32 0, %v961
    %v963 = vrot.slane %v958, %v962
    %v964 = vlaneseq
    %v965 = vshrl.u32 %v964, 7
    %v966 = vsub.s32 1, %v965
    %v967 = vrot.slane %v958, %v966
    %v970 = vmul.f32 %v955, %v963
    %v971 = vmul.f32 %v956, %v967
    %972 = vst [vmem:[#allocation2 + $0x70] sm:$0xff] %v970
    %973 = vst [vmem:[#allocation2 + $0x78] sm:$0xff] %v971
    %974 = vrot.lane.b32.xlu0 %v786, 111
    %v975 = vpop.permute.xlu0 %974
    %976 = vrot.lane.b32.xlu0 %v787, 111
    %v977 = vpop.permute.xlu0 %976
    %vm978 = vcmp.lt.s32.totalorder %v793, 111
    %v979 = vsel %vm978, %v975, %v977
    %v980 = vsel %vm978, %v977, %v975
    %s981 = scalar_lea.vmem [#allocation8], 16
    %v982 = vld [vmem:[%s981] ss:$8 sm:$0x3]
    %v984 = vlaneseq
    %v985 = vshrl.u32 %v984, 7
    %v986 = vsub.s32 0, %v985
    %v987 = vrot.slane %v982, %v986
    %v988 = vlaneseq
    %v989 = vshrl.u32 %v988, 7
    %v990 = vsub.s32 1, %v989
    %v991 = vrot.slane %v982, %v990
    %v994 = vmul.f32 %v979, %v987
    %v995 = vmul.f32 %v980, %v991
    %996 = vst [vmem:[#allocation2 + $0x80] sm:$0xff] %v994
    %997 = vst [vmem:[#allocation2 + $0x88] sm:$0xff] %v995
    %v998 = vld [vmem:[#allocation10] sm:$0xff]
    %v999 = vld [vmem:[#allocation10 + $0x8] sm:$0xff]
    %v1000 = vld [vmem:[#allocation2] sm:$0xff]
    %v1001 = vld [vmem:[#allocation2 + $0x8] sm:$0xff]
    %v1002 = vld [vmem:[#allocation2 + $0x10] sm:$0xff]
    %v1003 = vld [vmem:[#allocation2 + $0x18] sm:$0xff]
    %v1004 = vld [vmem:[#allocation2 + $0x20] sm:$0xff]
    %v1005 = vld [vmem:[#allocation2 + $0x28] sm:$0xff]
    %v1006 = vld [vmem:[#allocation2 + $0x30] sm:$0xff]
    %v1007 = vld [vmem:[#allocation2 + $0x38] sm:$0xff]
    %v1008 = vld [vmem:[#allocation2 + $0x40] sm:$0xff]
    %v1009 = vld [vmem:[#allocation2 + $0x48] sm:$0xff]
    %v1010 = vld [vmem:[#allocation2 + $0x50] sm:$0xff]
    %v1011 = vld [vmem:[#allocation2 + $0x58] sm:$0xff]
    %v1012 = vld [vmem:[#allocation2 + $0x60] sm:$0xff]
    %v1013 = vld [vmem:[#allocation2 + $0x68] sm:$0xff]
    %v1014 = vld [vmem:[#allocation2 + $0x70] sm:$0xff]
    %v1015 = vld [vmem:[#allocation2 + $0x78] sm:$0xff]
    %v1016 = vld [vmem:[#allocation2 + $0x80] sm:$0xff]
    %v1017 = vld [vmem:[#allocation2 + $0x88] sm:$0xff]
    %v1018 = vld [vmem:[#allocation11] sm:$0xff]
    %v1019 = vld [vmem:[#allocation11 + $0x8] sm:$0xff]
    %1021 = vset.pattern.permute.xlu0 0
    %1022 = vperm.xlu0 %1021, %v1018
    %v1023 = vpop.permute.xlu0 %1022
    %1026 = vset.pattern.permute.xlu0 0
    %1027 = vperm.xlu0 %1026, %v1019
    %v1028 = vpop.permute.xlu0 %1027
    %vm1030 = vcmask 588800
    %v1032 = vsel %vm1030, %v998, 0
    %v1035 = vsel %vm1030, %v999, 0
    %1037 = vmatprep.subr.mxu0 %v1001
    %1038 = vmatpush1.msra.mxu0 %v1000
    %1039 = vmatprep.subr.mxu0 %v1003
    %1040 = vmatpush1.msra.mxu0 %v1002
    %1041 = vmatprep.subr.mxu0 %v1005
    %1042 = vmatpush1.msra.mxu0 %v1004
    %1043 = vmatprep.subr.mxu0 %v1007
    %1044 = vmatpush1.msra.mxu0 %v1006
    %1045 = vmatprep.subr.mxu0 %v1009
    %1046 = vmatpush1.msra.mxu0 %v1008
    %1047 = vmatprep.subr.mxu0 %v1011
    %1048 = vmatpush1.msra.mxu0 %v1010
    %1049 = vmatprep.subr.mxu0 %v1013
    %1050 = vmatpush1.msra.mxu0 %v1012
    %1051 = vmatprep.subr.mxu0 %v1015
    %1052 = vmatpush1.msra.mxu0 %v1014
    %1053 = vmatprep.subr.mxu0 %v1017
    %1054 = vmatpush1.msra.mxu0 %v1016
    %1055 = vmatprep.subr.mxu0 0.0
    %1056 = vmatpush1.msra.mxu0 0.0
    %1057 = vmatprep.subr.mxu0 0.0
    %1058 = vmatpush1.msra.mxu0 0.0
    %1059 = vmatprep.subr.mxu0 0.0
    %1060 = vmatpush1.msra.mxu0 0.0
    %1061 = vmatprep.subr.mxu0 0.0
    %1062 = vmatpush1.msra.mxu0 0.0
    %1063 = vmatprep.subr.mxu0 0.0
    %1064 = vmatpush1.msra.mxu0 0.0
    %1065 = vmatprep.subr.mxu0 0.0
    %1066 = vmatpush1.msra.mxu0 0.0
    %1067 = vmatprep.subr.mxu0 0.0
    %1068 = vmatpush1.msra.mxu0 0.0
    %1069 = vmatprep.subr.mxu0 0.0
    %1070 = vmatpush1.msra.mxu0 0.0
    %1071 = vmatprep.subr.mxu0 0.0
    %1072 = vmatpush1.msra.mxu0 0.0
    %1073 = vmatprep.subr.mxu0 0.0
    %1074 = vmatpush1.msra.mxu0 0.0
    %1075 = vmatprep.subr.mxu0 0.0
    %1076 = vmatpush1.msra.mxu0 0.0
    %1077 = vmatprep.subr.mxu0 0.0
    %1078 = vmatpush1.msra.mxu0 0.0
    %1079 = vmatprep.subr.mxu0 0.0
    %1080 = vmatpush1.msra.mxu0 0.0
    %1081 = vmatprep.subr.mxu0 0.0
    %1082 = vmatpush1.msra.mxu0 0.0
    %1083 = vmatprep.subr.mxu0 0.0
    %1084 = vmatpush1.msra.mxu0 0.0
    %1085 = vmatprep.subr.mxu0 0.0
    %1086 = vmatpush1.msra.mxu0 0.0
    %1087 = vmatprep.subr.mxu0 0.0
    %1088 = vmatpush1.msra.mxu0 0.0
    %1089 = vmatprep.subr.mxu0 0.0
    %1090 = vmatpush1.msra.mxu0 0.0
    %1091 = vmatprep.subr.mxu0 0.0
    %1092 = vmatpush1.msra.mxu0 0.0
    %1093 = vmatprep.subr.mxu0 0.0
    %1094 = vmatpush1.msra.mxu0 0.0
    %1095 = vmatprep.subr.mxu0 0.0
    %1096 = vmatpush1.msra.mxu0 0.0
    %1097 = vmatprep.subr.mxu0 0.0
    %1098 = vmatpush1.msra.mxu0 0.0
    %1099 = vmatprep.subr.mxu0 0.0
    %1100 = vmatpush1.msra.mxu0 0.0
    %1101 = vmatprep.mubr.f32.mxu0 0.0
    %1102 = vmatmul.mubr.f32.gmra.mrb[0].mxu0 %v1032
    %v1103 = vpop.f32.mrb[0].mxu0
    %v1104 = vadd.f32 %v1023, %v1103
    %v1105 = vpop.f32.mrb[0].mxu0
    %v1106 = vadd.f32 %v1023, %v1105
    %1107 = vmatprep.mubr.f32.mxu0 0.0
    %1108 = vmatmul.mubr.f32.gmra.mrb[0].mxu0 %v1035
    %v1109 = vpop.f32.mrb[0].mxu0
    %v1110 = vadd.f32 %v1028, %v1109
    %v1111 = vpop.f32.mrb[0].mxu0
    %v1112 = vadd.f32 %v1028, %v1111
    %1113 = vdwg.mxu0
    %v1114 = vmax.f32 %v1104, 0.0
    %v1115 = vmax.f32 %v1106, 0.0
    %v1116 = vmax.f32 %v1110, 0.0
    %v1117 = vmax.f32 %v1112, 0.0
    %1118 = vrot.lane.b32.xlu0 %v1114, 17
    %v1119 = vpop.permute.xlu0 %1118
    %1120 = vrot.lane.b32.xlu0 %v1116, 17
    %v1121 = vpop.permute.xlu0 %1120
    %1122 = vrot.lane.b32.xlu0 %v1115, 17
    %v1123 = vpop.permute.xlu0 %1122
    %1124 = vrot.lane.b32.xlu0 %v1117, 17
    %v1125 = vpop.permute.xlu0 %1124
    %v1126 = vsel %vm794, %v1119, %v1123
    %v1127 = vsel %vm794, %v1121, %v1125
    %v1128 = vsel %vm794, %v1123, %v1119
    %v1129 = vsel %vm794, %v1125, %v1121
    %v1130 = vld [vmem:[#allocation8] ss:$8 sm:$0x3]
    %v1132 = vlaneseq
    %v1133 = vshrl.u32 %v1132, 7
    %v1134 = vsub.s32 0, %v1133
    %v1135 = vrot.slane %v1130, %v1134
    %v1136 = vlaneseq
    %v1137 = vshrl.u32 %v1136, 7
    %v1138 = vsub.s32 1, %v1137
    %v1139 = vrot.slane %v1130, %v1138
    %v1142 = vmul.f32 %v1128, %v1135
    %v1143 = vmul.f32 %v1126, %v1139
    %v1144 = vmul.f32 %v1129, %v1135
    %v1145 = vmul.f32 %v1127, %v1139
    %1146 = vst [vmem:[#allocation2] sm:$0xff] %v1142
    %1147 = vst [vmem:[#allocation2 + $0x8] sm:$0xff] %v1143
    %1148 = vst [vmem:[#allocation2 + $0x10] sm:$0xff] %v1144
    %1149 = vst [vmem:[#allocation2 + $0x18] sm:$0xff] %v1145
    %1150 = vrot.lane.b32.xlu0 %v1114, 16
    %v1151 = vpop.permute.xlu0 %1150
    %1152 = vrot.lane.b32.xlu0 %v1116, 16
    %v1153 = vpop.permute.xlu0 %1152
    %1154 = vrot.lane.b32.xlu0 %v1115, 16
    %v1155 = vpop.permute.xlu0 %1154
    %1156 = vrot.lane.b32.xlu0 %v1117, 16
    %v1157 = vpop.permute.xlu0 %1156
    %v1158 = vsel %vm817, %v1151, %v1155
    %v1159 = vsel %vm817, %v1153, %v1157
    %v1160 = vsel %vm817, %v1155, %v1151
    %v1161 = vsel %vm817, %v1157, %v1153
    %v1162 = vld [vmem:[%s820] ss:$8 sm:$0x3]
    %v1164 = vlaneseq
    %v1165 = vshrl.u32 %v1164, 7
    %v1166 = vsub.s32 0, %v1165
    %v1167 = vrot.slane %v1162, %v1166
    %v1168 = vlaneseq
    %v1169 = vshrl.u32 %v1168, 7
    %v1170 = vsub.s32 1, %v1169
    %v1171 = vrot.slane %v1162, %v1170
    %v1174 = vmul.f32 %v1160, %v1167
    %v1175 = vmul.f32 %v1158, %v1171
    %v1176 = vmul.f32 %v1161, %v1167
    %v1177 = vmul.f32 %v1159, %v1171
    %1178 = vst [vmem:[#allocation2 + $0x20] sm:$0xff] %v1174
    %1179 = vst [vmem:[#allocation2 + $0x28] sm:$0xff] %v1175
    %1180 = vst [vmem:[#allocation2 + $0x30] sm:$0xff] %v1176
    %1181 = vst [vmem:[#allocation2 + $0x38] sm:$0xff] %v1177
    %1182 = vrot.lane.b32.xlu0 %v1114, 15
    %v1183 = vpop.permute.xlu0 %1182
    %1184 = vrot.lane.b32.xlu0 %v1116, 15
    %v1185 = vpop.permute.xlu0 %1184
    %1186 = vrot.lane.b32.xlu0 %v1115, 15
    %v1187 = vpop.permute.xlu0 %1186
    %1188 = vrot.lane.b32.xlu0 %v1117, 15
    %v1189 = vpop.permute.xlu0 %1188
    %v1190 = vsel %vm841, %v1183, %v1187
    %v1191 = vsel %vm841, %v1185, %v1189
    %v1192 = vsel %vm841, %v1187, %v1183
    %v1193 = vsel %vm841, %v1189, %v1185
    %v1194 = vld [vmem:[%s844] ss:$8 sm:$0x3]
    %v1196 = vlaneseq
    %v1197 = vshrl.u32 %v1196, 7
    %v1198 = vsub.s32 0, %v1197
    %v1199 = vrot.slane %v1194, %v1198
    %v1200 = vlaneseq
    %v1201 = vshrl.u32 %v1200, 7
    %v1202 = vsub.s32 1, %v1201
    %v1203 = vrot.slane %v1194, %v1202
    %v1206 = vmul.f32 %v1192, %v1199
    %v1207 = vmul.f32 %v1190, %v1203
    %v1208 = vmul.f32 %v1193, %v1199
    %v1209 = vmul.f32 %v1191, %v1203
    %1210 = vst [vmem:[#allocation2 + $0x40] sm:$0xff] %v1206
    %1211 = vst [vmem:[#allocation2 + $0x48] sm:$0xff] %v1207
    %1212 = vst [vmem:[#allocation2 + $0x50] sm:$0xff] %v1208
    %1213 = vst [vmem:[#allocation2 + $0x58] sm:$0xff] %v1209
    %1214 = vrot.lane.b32.xlu0 %v1114, 1
    %v1215 = vpop.permute.xlu0 %1214
    %1216 = vrot.lane.b32.xlu0 %v1116, 1
    %v1217 = vpop.permute.xlu0 %1216
    %1218 = vrot.lane.b32.xlu0 %v1115, 1
    %v1219 = vpop.permute.xlu0 %1218
    %1220 = vrot.lane.b32.xlu0 %v1117, 1
    %v1221 = vpop.permute.xlu0 %1220
    %v1222 = vsel %vm865, %v1215, %v1219
    %v1223 = vsel %vm865, %v1217, %v1221
    %v1224 = vsel %vm865, %v1219, %v1215
    %v1225 = vsel %vm865, %v1221, %v1217
    %v1226 = vld [vmem:[%s868] ss:$8 sm:$0x3]
    %v1228 = vlaneseq
    %v1229 = vshrl.u32 %v1228, 7
    %v1230 = vsub.s32 0, %v1229
    %v1231 = vrot.slane %v1226, %v1230
    %v1232 = vlaneseq
    %v1233 = vshrl.u32 %v1232, 7
    %v1234 = vsub.s32 1, %v1233
    %v1235 = vrot.slane %v1226, %v1234
    %v1238 = vmul.f32 %v1224, %v1231
    %v1239 = vmul.f32 %v1222, %v1235
    %v1240 = vmul.f32 %v1225, %v1231
    %v1241 = vmul.f32 %v1223, %v1235
    %1242 = vst [vmem:[#allocation2 + $0x60] sm:$0xff] %v1238
    %1243 = vst [vmem:[#allocation2 + $0x68] sm:$0xff] %v1239
    %1244 = vst [vmem:[#allocation2 + $0x70] sm:$0xff] %v1240
    %1245 = vst [vmem:[#allocation2 + $0x78] sm:$0xff] %v1241
    %v1246 = vld [vmem:[%s885] ss:$8 sm:$0x3]
    %v1248 = vlaneseq
    %v1249 = vshrl.u32 %v1248, 7
    %v1250 = vsub.s32 0, %v1249
    %v1251 = vrot.slane %v1246, %v1250
    %v1252 = vlaneseq
    %v1253 = vshrl.u32 %v1252, 7
    %v1254 = vsub.s32 1, %v1253
    %v1255 = vrot.slane %v1246, %v1254
    %v1258 = vmul.f32 %v1114, %v1251
    %v1259 = vmul.f32 %v1115, %v1255
    %v1260 = vmul.f32 %v1116, %v1251
    %v1261 = vmul.f32 %v1117, %v1255
    %1262 = vst [vmem:[#allocation2 + $0x80] sm:$0xff] %v1258
    %1263 = vst [vmem:[#allocation2 + $0x88] sm:$0xff] %v1259
    %1264 = vst [vmem:[#allocation2 + $0x90] sm:$0xff] %v1260
    %1265 = vst [vmem:[#allocation2 + $0x98] sm:$0xff] %v1261
    %1266 = vrot.lane.b32.xlu0 %v1114, 127
    %v1267 = vpop.permute.xlu0 %1266
    %1268 = vrot.lane.b32.xlu0 %v1116, 127
    %v1269 = vpop.permute.xlu0 %1268
    %1270 = vrot.lane.b32.xlu0 %v1115, 127
    %v1271 = vpop.permute.xlu0 %1270
    %1272 = vrot.lane.b32.xlu0 %v1117, 127
    %v1273 = vpop.permute.xlu0 %1272
    %v1274 = vsel %vm906, %v1267, %v1271
    %v1275 = vsel %vm906, %v1269, %v1273
    %v1276 = vsel %vm906, %v1271, %v1267
    %v1277 = vsel %vm906, %v1273, %v1269
    %v1278 = vld [vmem:[%s909] ss:$8 sm:$0x3]
    %v1280 = vlaneseq
    %v1281 = vshrl.u32 %v1280, 7
    %v1282 = vsub.s32 0, %v1281
    %v1283 = vrot.slane %v1278, %v1282
    %v1284 = vlaneseq
    %v1285 = vshrl.u32 %v1284, 7
    %v1286 = vsub.s32 1, %v1285
    %v1287 = vrot.slane %v1278, %v1286
    %v1290 = vmul.f32 %v1274, %v1283
    %v1291 = vmul.f32 %v1276, %v1287
    %v1292 = vmul.f32 %v1275, %v1283
    %v1293 = vmul.f32 %v1277, %v1287
    %1294 = vst [vmem:[#allocation2 + $0xa0] sm:$0xff] %v1290
    %1295 = vst [vmem:[#allocation2 + $0xa8] sm:$0xff] %v1291
    %1296 = vst [vmem:[#allocation2 + $0xb0] sm:$0xff] %v1292
    %1297 = vst [vmem:[#allocation2 + $0xb8] sm:$0xff] %v1293
    %1298 = vrot.lane.b32.xlu0 %v1114, 113
    %v1299 = vpop.permute.xlu0 %1298
    %1300 = vrot.lane.b32.xlu0 %v1116, 113
    %v1301 = vpop.permute.xlu0 %1300
    %1302 = vrot.lane.b32.xlu0 %v1115, 113
    %v1303 = vpop.permute.xlu0 %1302
    %1304 = vrot.lane.b32.xlu0 %v1117, 113
    %v1305 = vpop.permute.xlu0 %1304
    %v1306 = vsel %vm930, %v1299, %v1303
    %v1307 = vsel %vm930, %v1301, %v1305
    %v1308 = vsel %vm930, %v1303, %v1299
    %v1309 = vsel %vm930, %v1305, %v1301
    %v1310 = vld [vmem:[%s933] ss:$8 sm:$0x3]
    %v1312 = vlaneseq
    %v1313 = vshrl.u32 %v1312, 7
    %v1314 = vsub.s32 0, %v1313
    %v1315 = vrot.slane %v1310, %v1314
    %v1316 = vlaneseq
    %v1317 = vshrl.u32 %v1316, 7
    %v1318 = vsub.s32 1, %v1317
    %v1319 = vrot.slane %v1310, %v1318
    %v1322 = vmul.f32 %v1306, %v1315
    %v1323 = vmul.f32 %v1308, %v1319
    %v1324 = vmul.f32 %v1307, %v1315
    %v1325 = vmul.f32 %v1309, %v1319
    %1326 = vst [vmem:[#allocation2 + $0xc0] sm:$0xff] %v1322
    %1327 = vst [vmem:[#allocation2 + $0xc8] sm:$0xff] %v1323
    %1328 = vst [vmem:[#allocation2 + $0xd0] sm:$0xff] %v1324
    %1329 = vst [vmem:[#allocation2 + $0xd8] sm:$0xff] %v1325
    %1330 = vrot.lane.b32.xlu0 %v1114, 112
    %v1331 = vpop.permute.xlu0 %1330
    %1332 = vrot.lane.b32.xlu0 %v1116, 112
    %v1333 = vpop.permute.xlu0 %1332
    %1334 = vrot.lane.b32.xlu0 %v1115, 112
    %v1335 = vpop.permute.xlu0 %1334
    %1336 = vrot.lane.b32.xlu0 %v1117, 112
    %v1337 = vpop.permute.xlu0 %1336
    %v1338 = vsel %vm954, %v1331, %v1335
    %v1339 = vsel %vm954, %v1333, %v1337
    %v1340 = vsel %vm954, %v1335, %v1331
    %v1341 = vsel %vm954, %v1337, %v1333
    %v1342 = vld [vmem:[%s957] ss:$8 sm:$0x3]
    %v1344 = vlaneseq
    %v1345 = vshrl.u32 %v1344, 7
    %v1346 = vsub.s32 0, %v1345
    %v1347 = vrot.slane %v1342, %v1346
    %v1348 = vlaneseq
    %v1349 = vshrl.u32 %v1348, 7
    %v1350 = vsub.s32 1, %v1349
    %v1351 = vrot.slane %v1342, %v1350
    %v1354 = vmul.f32 %v1338, %v1347
    %v1355 = vmul.f32 %v1340, %v1351
    %v1356 = vmul.f32 %v1339, %v1347
    %v1357 = vmul.f32 %v1341, %v1351
    %1358 = vst [vmem:[#allocation2 + $0xe0] sm:$0xff] %v1354
    %1359 = vst [vmem:[#allocation2 + $0xe8] sm:$0xff] %v1355
    %1360 = vst [vmem:[#allocation2 + $0xf0] sm:$0xff] %v1356
    %1361 = vst [vmem:[#allocation2 + $0xf8] sm:$0xff] %v1357
    %1362 = vrot.lane.b32.xlu0 %v1114, 111
    %v1363 = vpop.permute.xlu0 %1362
    %1364 = vrot.lane.b32.xlu0 %v1116, 111
    %v1365 = vpop.permute.xlu0 %1364
    %1366 = vrot.lane.b32.xlu0 %v1115, 111
    %v1367 = vpop.permute.xlu0 %1366
    %1368 = vrot.lane.b32.xlu0 %v1117, 111
    %v1369 = vpop.permute.xlu0 %1368
    %v1370 = vsel %vm978, %v1363, %v1367
    %v1371 = vsel %vm978, %v1365, %v1369
    %v1372 = vsel %vm978, %v1367, %v1363
    %v1373 = vsel %vm978, %v1369, %v1365
    %v1374 = vld [vmem:[%s981] ss:$8 sm:$0x3]
    %v1376 = vlaneseq
    %v1377 = vshrl.u32 %v1376, 7
    %v1378 = vsub.s32 0, %v1377
    %v1379 = vrot.slane %v1374, %v1378
    %v1380 = vlaneseq
    %v1381 = vshrl.u32 %v1380, 7
    %v1382 = vsub.s32 1, %v1381
    %v1383 = vrot.slane %v1374, %v1382
    %v1386 = vmul.f32 %v1370, %v1379
    %v1387 = vmul.f32 %v1372, %v1383
    %v1388 = vmul.f32 %v1371, %v1379
    %v1389 = vmul.f32 %v1373, %v1383
    %1390 = vst [vmem:[#allocation2 + $0x100] sm:$0xff] %v1386
    %1391 = vst [vmem:[#allocation2 + $0x108] sm:$0xff] %v1387
    %1392 = vst [vmem:[#allocation2 + $0x110] sm:$0xff] %v1388
    %1393 = vst [vmem:[#allocation2 + $0x118] sm:$0xff] %v1389
    %v1394 = vld [vmem:[%s7] sm:$0xff]
    %v1395 = vld [vmem:[%s7 + $0x8] sm:$0xff]
    %v1396 = vld [vmem:[#allocation2] sm:$0xff]
    %v1397 = vld [vmem:[#allocation2 + $0x8] sm:$0xff]
    %v1398 = vld [vmem:[#allocation2 + $0x10] sm:$0xff]
    %v1399 = vld [vmem:[#allocation2 + $0x18] sm:$0xff]
    %v1400 = vld [vmem:[#allocation2 + $0x20] sm:$0xff]
    %v1401 = vld [vmem:[#allocation2 + $0x28] sm:$0xff]
    %v1402 = vld [vmem:[#allocation2 + $0x30] sm:$0xff]
    %v1403 = vld [vmem:[#allocation2 + $0x38] sm:$0xff]
    %v1404 = vld [vmem:[#allocation2 + $0x40] sm:$0xff]
    %v1405 = vld [vmem:[#allocation2 + $0x48] sm:$0xff]
    %v1406 = vld [vmem:[#allocation2 + $0x50] sm:$0xff]
    %v1407 = vld [vmem:[#allocation2 + $0x58] sm:$0xff]
    %v1408 = vld [vmem:[#allocation2 + $0x60] sm:$0xff]
    %v1409 = vld [vmem:[#allocation2 + $0x68] sm:$0xff]
    %v1410 = vld [vmem:[#allocation2 + $0x70] sm:$0xff]
    %v1411 = vld [vmem:[#allocation2 + $0x78] sm:$0xff]
    %v1412 = vld [vmem:[#allocation2 + $0x80] sm:$0xff]
    %v1413 = vld [vmem:[#allocation2 + $0x88] sm:$0xff]
    %v1414 = vld [vmem:[#allocation2 + $0x90] sm:$0xff]
    %v1415 = vld [vmem:[#allocation2 + $0x98] sm:$0xff]
    %v1416 = vld [vmem:[#allocation2 + $0xa0] sm:$0xff]
    %v1417 = vld [vmem:[#allocation2 + $0xa8] sm:$0xff]
    %v1418 = vld [vmem:[#allocation2 + $0xb0] sm:$0xff]
    %v1419 = vld [vmem:[#allocation2 + $0xb8] sm:$0xff]
    %v1420 = vld [vmem:[#allocation2 + $0xc0] sm:$0xff]
    %v1421 = vld [vmem:[#allocation2 + $0xc8] sm:$0xff]
    %v1422 = vld [vmem:[#allocation2 + $0xd0] sm:$0xff]
    %v1423 = vld [vmem:[#allocation2 + $0xd8] sm:$0xff]
    %v1424 = vld [vmem:[#allocation2 + $0xe0] sm:$0xff]
    %v1425 = vld [vmem:[#allocation2 + $0xe8] sm:$0xff]
    %v1426 = vld [vmem:[#allocation2 + $0xf0] sm:$0xff]
    %v1427 = vld [vmem:[#allocation2 + $0xf8] sm:$0xff]
    %v1428 = vld [vmem:[#allocation2 + $0x100] sm:$0xff]
    %v1429 = vld [vmem:[#allocation2 + $0x108] sm:$0xff]
    %v1430 = vld [vmem:[#allocation2 + $0x110] sm:$0xff]
    %v1431 = vld [vmem:[#allocation2 + $0x118] sm:$0xff]
    %v1432 = vld [vmem:[%s8] sm:$0xff]
    %1434 = vset.pattern.permute.xlu0 0
    %1435 = vperm.xlu0 %1434, %v1432
    %v1436 = vpop.permute.xlu0 %1435
    %vm1438 = vcmask 130048
    %v1440 = vsel %vm1438, %v1395, 0
    %1442 = vmatprep.subr.mxu0 %v1397
    %1443 = vmatpush1.msra.mxu0 %v1396
    %1444 = vmatprep.subr.mxu0 %v1399
    %1445 = vmatpush1.msra.mxu0 %v1398
    %1446 = vmatprep.subr.mxu0 %v1401
    %1447 = vmatpush1.msra.mxu0 %v1400
    %1448 = vmatprep.subr.mxu0 %v1403
    %1449 = vmatpush1.msra.mxu0 %v1402
    %1450 = vmatprep.subr.mxu0 %v1405
    %1451 = vmatpush1.msra.mxu0 %v1404
    %1452 = vmatprep.subr.mxu0 %v1407
    %1453 = vmatpush1.msra.mxu0 %v1406
    %1454 = vmatprep.subr.mxu0 %v1409
    %1455 = vmatpush1.msra.mxu0 %v1408
    %1456 = vmatprep.subr.mxu0 %v1411
    %1457 = vmatpush1.msra.mxu0 %v1410
    %1458 = vmatprep.subr.mxu0 %v1413
    %1459 = vmatpush1.msra.mxu0 %v1412
    %1460 = vmatprep.subr.mxu0 %v1415
    %1461 = vmatpush1.msra.mxu0 %v1414
    %1462 = vmatprep.subr.mxu0 %v1417
    %1463 = vmatpush1.msra.mxu0 %v1416
    %1464 = vmatprep.subr.mxu0 %v1419
    %1465 = vmatpush1.msra.mxu0 %v1418
    %1466 = vmatprep.subr.mxu0 %v1421
    %1467 = vmatpush1.msra.mxu0 %v1420
    %1468 = vmatprep.subr.mxu0 %v1423
    %1469 = vmatpush1.msra.mxu0 %v1422
    %1470 = vmatprep.subr.mxu0 %v1425
    %1471 = vmatpush1.msra.mxu0 %v1424
    %1472 = vmatprep.subr.mxu0 %v1427
    %1473 = vmatpush1.msra.mxu0 %v1426
    %1474 = vmatprep.subr.mxu0 %v1429
    %1475 = vmatpush1.msra.mxu0 %v1428
    %1476 = vmatprep.subr.mxu0 %v1431
    %1477 = vmatpush1.msra.mxu0 %v1430
    %1478 = vmatprep.subr.mxu0 0.0
    %1479 = vmatpush1.msra.mxu0 0.0
    %1480 = vmatprep.subr.mxu0 0.0
    %1481 = vmatpush1.msra.mxu0 0.0
    %1482 = vmatprep.subr.mxu0 0.0
    %1483 = vmatpush1.msra.mxu0 0.0
    %1484 = vmatprep.subr.mxu0 0.0
    %1485 = vmatpush1.msra.mxu0 0.0
    %1486 = vmatprep.subr.mxu0 0.0
    %1487 = vmatpush1.msra.mxu0 0.0
    %1488 = vmatprep.subr.mxu0 0.0
    %1489 = vmatpush1.msra.mxu0 0.0
    %1490 = vmatprep.subr.mxu0 0.0
    %1491 = vmatpush1.msra.mxu0 0.0
    %1492 = vmatprep.subr.mxu0 0.0
    %1493 = vmatpush1.msra.mxu0 0.0
    %1494 = vmatprep.subr.mxu0 0.0
    %1495 = vmatpush1.msra.mxu0 0.0
    %1496 = vmatprep.subr.mxu0 0.0
    %1497 = vmatpush1.msra.mxu0 0.0
    %1498 = vmatprep.subr.mxu0 0.0
    %1499 = vmatpush1.msra.mxu0 0.0
    %1500 = vmatprep.subr.mxu0 0.0
    %1501 = vmatpush1.msra.mxu0 0.0
    %1502 = vmatprep.subr.mxu0 0.0
    %1503 = vmatpush1.msra.mxu0 0.0
    %1504 = vmatprep.subr.mxu0 0.0
    %1505 = vmatpush1.msra.mxu0 0.0
    %1506 = vmatprep.mubr.f32.mxu0 %v1440
    %1507 = vmatmul.mubr.f32.gmra.mrb[0].mxu0 %v1394
    %v1508 = vpop.f32.mrb[0].mxu0
    %v1509 = vadd.f32 %v1436, %v1508
    %v1510 = vpop.f32.mrb[0].mxu0
    %v1511 = vadd.f32 %v1436, %v1510
    %1512 = vdwg.mxu0
    %v1513 = vmax.f32 %v1509, 0.0
    %v1514 = vmax.f32 %v1511, 0.0
    %1515 = vrot.lane.b32.xlu0 %v1513, 17
    %v1516 = vpop.permute.xlu0 %1515
    %1517 = vrot.lane.b32.xlu0 %v1514, 17
    %v1518 = vpop.permute.xlu0 %1517
    %v1519 = vsel %vm794, %v1516, %v1518
    %v1520 = vsel %vm794, %v1518, %v1516
    %v1521 = vld [vmem:[#allocation8] ss:$8 sm:$0x3]
    %v1523 = vlaneseq
    %v1524 = vshrl.u32 %v1523, 7
    %v1525 = vsub.s32 0, %v1524
    %v1526 = vrot.slane %v1521, %v1525
    %v1527 = vlaneseq
    %v1528 = vshrl.u32 %v1527, 7
    %v1529 = vsub.s32 1, %v1528
    %v1530 = vrot.slane %v1521, %v1529
    %v1533 = vmul.f32 %v1520, %v1526
    %v1534 = vmul.f32 %v1519, %v1530
    %1535 = vst [vmem:[#allocation2] sm:$0xff] %v1533
    %1536 = vst [vmem:[#allocation2 + $0x8] sm:$0xff] %v1534
    %1537 = vrot.lane.b32.xlu0 %v1513, 16
    %v1538 = vpop.permute.xlu0 %1537
    %1539 = vrot.lane.b32.xlu0 %v1514, 16
    %v1540 = vpop.permute.xlu0 %1539
    %v1541 = vsel %vm817, %v1538, %v1540
    %v1542 = vsel %vm817, %v1540, %v1538
    %v1543 = vld [vmem:[%s820] ss:$8 sm:$0x3]
    %v1545 = vlaneseq
    %v1546 = vshrl.u32 %v1545, 7
    %v1547 = vsub.s32 0, %v1546
    %v1548 = vrot.slane %v1543, %v1547
    %v1549 = vlaneseq
    %v1550 = vshrl.u32 %v1549, 7
    %v1551 = vsub.s32 1, %v1550
    %v1552 = vrot.slane %v1543, %v1551
    %v1555 = vmul.f32 %v1542, %v1548
    %v1556 = vmul.f32 %v1541, %v1552
    %1557 = vst [vmem:[#allocation2 + $0x10] sm:$0xff] %v1555
    %1558 = vst [vmem:[#allocation2 + $0x18] sm:$0xff] %v1556
    %1559 = vrot.lane.b32.xlu0 %v1513, 15
    %v1560 = vpop.permute.xlu0 %1559
    %1561 = vrot.lane.b32.xlu0 %v1514, 15
    %v1562 = vpop.permute.xlu0 %1561
    %v1563 = vsel %vm841, %v1560, %v1562
    %v1564 = vsel %vm841, %v1562, %v1560
    %v1565 = vld [vmem:[%s844] ss:$8 sm:$0x3]
    %v1567 = vlaneseq
    %v1568 = vshrl.u32 %v1567, 7
    %v1569 = vsub.s32 0, %v1568
    %v1570 = vrot.slane %v1565, %v1569
    %v1571 = vlaneseq
    %v1572 = vshrl.u32 %v1571, 7
    %v1573 = vsub.s32 1, %v1572
    %v1574 = vrot.slane %v1565, %v1573
    %v1577 = vmul.f32 %v1564, %v1570
    %v1578 = vmul.f32 %v1563, %v1574
    %1579 = vst [vmem:[#allocation2 + $0x20] sm:$0xff] %v1577
    %1580 = vst [vmem:[#allocation2 + $0x28] sm:$0xff] %v1578
    %1581 = vrot.lane.b32.xlu0 %v1513, 1
    %v1582 = vpop.permute.xlu0 %1581
    %1583 = vrot.lane.b32.xlu0 %v1514, 1
    %v1584 = vpop.permute.xlu0 %1583
    %v1585 = vsel %vm865, %v1582, %v1584
    %v1586 = vsel %vm865, %v1584, %v1582
    %v1587 = vld [vmem:[%s868] ss:$8 sm:$0x3]
    %v1589 = vlaneseq
    %v1590 = vshrl.u32 %v1589, 7
    %v1591 = vsub.s32 0, %v1590
    %v1592 = vrot.slane %v1587, %v1591
    %v1593 = vlaneseq
    %v1594 = vshrl.u32 %v1593, 7
    %v1595 = vsub.s32 1, %v1594
    %v1596 = vrot.slane %v1587, %v1595
    %v1599 = vmul.f32 %v1586, %v1592
    %v1600 = vmul.f32 %v1585, %v1596
    %1601 = vst [vmem:[#allocation2 + $0x30] sm:$0xff] %v1599
    %1602 = vst [vmem:[#allocation2 + $0x38] sm:$0xff] %v1600
    %v1603 = vld [vmem:[%s885] ss:$8 sm:$0x3]
    %v1605 = vlaneseq
    %v1606 = vshrl.u32 %v1605, 7
    %v1607 = vsub.s32 0, %v1606
    %v1608 = vrot.slane %v1603, %v1607
    %v1609 = vlaneseq
    %v1610 = vshrl.u32 %v1609, 7
    %v1611 = vsub.s32 1, %v1610
    %v1612 = vrot.slane %v1603, %v1611
    %v1615 = vmul.f32 %v1513, %v1608
    %v1616 = vmul.f32 %v1514, %v1612
    %1617 = vst [vmem:[#allocation2 + $0x40] sm:$0xff] %v1615
    %1618 = vst [vmem:[#allocation2 + $0x48] sm:$0xff] %v1616
    %1619 = vrot.lane.b32.xlu0 %v1513, 127
    %v1620 = vpop.permute.xlu0 %1619
    %1621 = vrot.lane.b32.xlu0 %v1514, 127
    %v1622 = vpop.permute.xlu0 %1621
    %v1623 = vsel %vm906, %v1620, %v1622
    %v1624 = vsel %vm906, %v1622, %v1620
    %v1625 = vld [vmem:[%s909] ss:$8 sm:$0x3]
    %v1627 = vlaneseq
    %v1628 = vshrl.u32 %v1627, 7
    %v1629 = vsub.s32 0, %v1628
    %v1630 = vrot.slane %v1625, %v1629
    %v1631 = vlaneseq
    %v1632 = vshrl.u32 %v1631, 7
    %v1633 = vsub.s32 1, %v1632
    %v1634 = vrot.slane %v1625, %v1633
    %v1637 = vmul.f32 %v1623, %v1630
    %v1638 = vmul.f32 %v1624, %v1634
    %1639 = vst [vmem:[#allocation2 + $0x50] sm:$0xff] %v1637
    %1640 = vst [vmem:[#allocation2 + $0x58] sm:$0xff] %v1638
    %1641 = vrot.lane.b32.xlu0 %v1513, 113
    %v1642 = vpop.permute.xlu0 %1641
    %1643 = vrot.lane.b32.xlu0 %v1514, 113
    %v1644 = vpop.permute.xlu0 %1643
    %v1645 = vsel %vm930, %v1642, %v1644
    %v1646 = vsel %vm930, %v1644, %v1642
    %v1647 = vld [vmem:[%s933] ss:$8 sm:$0x3]
    %v1649 = vlaneseq
    %v1650 = vshrl.u32 %v1649, 7
    %v1651 = vsub.s32 0, %v1650
    %v1652 = vrot.slane %v1647, %v1651
    %v1653 = vlaneseq
    %v1654 = vshrl.u32 %v1653, 7
    %v1655 = vsub.s32 1, %v1654
    %v1656 = vrot.slane %v1647, %v1655
    %v1659 = vmul.f32 %v1645, %v1652
    %v1660 = vmul.f32 %v1646, %v1656
    %1661 = vst [vmem:[#allocation2 + $0x60] sm:$0xff] %v1659
    %1662 = vst [vmem:[#allocation2 + $0x68] sm:$0xff] %v1660
    %1663 = vrot.lane.b32.xlu0 %v1513, 112
    %v1664 = vpop.permute.xlu0 %1663
    %1665 = vrot.lane.b32.xlu0 %v1514, 112
    %v1666 = vpop.permute.xlu0 %1665
    %v1667 = vsel %vm954, %v1664, %v1666
    %v1668 = vsel %vm954, %v1666, %v1664
    %v1669 = vld [vmem:[%s957] ss:$8 sm:$0x3]
    %v1671 = vlaneseq
    %v1672 = vshrl.u32 %v1671, 7
    %v1673 = vsub.s32 0, %v1672
    %v1674 = vrot.slane %v1669, %v1673
    %v1675 = vlaneseq
    %v1676 = vshrl.u32 %v1675, 7
    %v1677 = vsub.s32 1, %v1676
    %v1678 = vrot.slane %v1669, %v1677
    %v1681 = vmul.f32 %v1667, %v1674
    %v1682 = vmul.f32 %v1668, %v1678
    %1683 = vst [vmem:[#allocation2 + $0x70] sm:$0xff] %v1681
    %1684 = vst [vmem:[#allocation2 + $0x78] sm:$0xff] %v1682
    %1685 = vrot.lane.b32.xlu0 %v1513, 111
    %v1686 = vpop.permute.xlu0 %1685
    %1687 = vrot.lane.b32.xlu0 %v1514, 111
    %v1688 = vpop.permute.xlu0 %1687
    %v1689 = vsel %vm978, %v1686, %v1688
    %v1690 = vsel %vm978, %v1688, %v1686
    %v1691 = vld [vmem:[%s981] ss:$8 sm:$0x3]
    %v1693 = vlaneseq
    %v1694 = vshrl.u32 %v1693, 7
    %v1695 = vsub.s32 0, %v1694
    %v1696 = vrot.slane %v1691, %v1695
    %v1697 = vlaneseq
    %v1698 = vshrl.u32 %v1697, 7
    %v1699 = vsub.s32 1, %v1698
    %v1700 = vrot.slane %v1691, %v1699
    %v1703 = vmul.f32 %v1689, %v1696
    %v1704 = vmul.f32 %v1690, %v1700
    %1705 = vst [vmem:[#allocation2 + $0x80] sm:$0xff] %v1703
    %1706 = vst [vmem:[#allocation2 + $0x88] sm:$0xff] %v1704
    %v1707 = vld [vmem:[%s9] sm:$0x3]
    %v1708 = vld [vmem:[#allocation2] sm:$0xff]
    %v1709 = vld [vmem:[#allocation2 + $0x8] sm:$0xff]
    %v1710 = vld [vmem:[#allocation2 + $0x10] sm:$0xff]
    %v1711 = vld [vmem:[#allocation2 + $0x18] sm:$0xff]
    %v1712 = vld [vmem:[#allocation2 + $0x20] sm:$0xff]
    %v1713 = vld [vmem:[#allocation2 + $0x28] sm:$0xff]
    %v1714 = vld [vmem:[#allocation2 + $0x30] sm:$0xff]
    %v1715 = vld [vmem:[#allocation2 + $0x38] sm:$0xff]
    %v1716 = vld [vmem:[#allocation2 + $0x40] sm:$0xff]
    %v1717 = vld [vmem:[#allocation2 + $0x48] sm:$0xff]
    %v1718 = vld [vmem:[#allocation2 + $0x50] sm:$0xff]
    %v1719 = vld [vmem:[#allocation2 + $0x58] sm:$0xff]
    %v1720 = vld [vmem:[#allocation2 + $0x60] sm:$0xff]
    %v1721 = vld [vmem:[#allocation2 + $0x68] sm:$0xff]
    %v1722 = vld [vmem:[#allocation2 + $0x70] sm:$0xff]
    %v1723 = vld [vmem:[#allocation2 + $0x78] sm:$0xff]
    %v1724 = vld [vmem:[#allocation2 + $0x80] sm:$0xff]
    %v1725 = vld [vmem:[#allocation2 + $0x88] sm:$0xff]
    %v1726 = vld [vmem:[%s10] sm:$0x3]
    %1728 = vset.pattern.permute.xlu0 0
    %1729 = vperm.xlu0 %1728, %v1726
    %v1730 = vpop.permute.xlu0 %1729
    %v1733 = vsel %vm1030, %v1707, 0
    %1735 = vmatprep.subr.mxu0 %v1709
    %1736 = vmatpush1.msra.mxu0 %v1708
    %1737 = vmatprep.subr.mxu0 %v1711
    %1738 = vmatpush1.msra.mxu0 %v1710
    %1739 = vmatprep.subr.mxu0 %v1713
    %1740 = vmatpush1.msra.mxu0 %v1712
    %1741 = vmatprep.subr.mxu0 %v1715
    %1742 = vmatpush1.msra.mxu0 %v1714
    %1743 = vmatprep.subr.mxu0 %v1717
    %1744 = vmatpush1.msra.mxu0 %v1716
    %1745 = vmatprep.subr.mxu0 %v1719
    %1746 = vmatpush1.msra.mxu0 %v1718
    %1747 = vmatprep.subr.mxu0 %v1721
    %1748 = vmatpush1.msra.mxu0 %v1720
    %1749 = vmatprep.subr.mxu0 %v1723
    %1750 = vmatpush1.msra.mxu0 %v1722
    %1751 = vmatprep.subr.mxu0 %v1725
    %1752 = vmatpush1.msra.mxu0 %v1724
    %1753 = vmatprep.subr.mxu0 0.0
    %1754 = vmatpush1.msra.mxu0 0.0
    %1755 = vmatprep.subr.mxu0 0.0
    %1756 = vmatpush1.msra.mxu0 0.0
    %1757 = vmatprep.subr.mxu0 0.0
    %1758 = vmatpush1.msra.mxu0 0.0
    %1759 = vmatprep.subr.mxu0 0.0
    %1760 = vmatpush1.msra.mxu0 0.0
    %1761 = vmatprep.subr.mxu0 0.0
    %1762 = vmatpush1.msra.mxu0 0.0
    %1763 = vmatprep.subr.mxu0 0.0
    %1764 = vmatpush1.msra.mxu0 0.0
    %1765 = vmatprep.subr.mxu0 0.0
    %1766 = vmatpush1.msra.mxu0 0.0
    %1767 = vmatprep.subr.mxu0 0.0
    %1768 = vmatpush1.msra.mxu0 0.0
    %1769 = vmatprep.subr.mxu0 0.0
    %1770 = vmatpush1.msra.mxu0 0.0
    %1771 = vmatprep.subr.mxu0 0.0
    %1772 = vmatpush1.msra.mxu0 0.0
    %1773 = vmatprep.subr.mxu0 0.0
    %1774 = vmatpush1.msra.mxu0 0.0
    %1775 = vmatprep.subr.mxu0 0.0
    %1776 = vmatpush1.msra.mxu0 0.0
    %1777 = vmatprep.subr.mxu0 0.0
    %1778 = vmatpush1.msra.mxu0 0.0
    %1779 = vmatprep.subr.mxu0 0.0
    %1780 = vmatpush1.msra.mxu0 0.0
    %1781 = vmatprep.subr.mxu0 0.0
    %1782 = vmatpush1.msra.mxu0 0.0
    %1783 = vmatprep.subr.mxu0 0.0
    %1784 = vmatpush1.msra.mxu0 0.0
    %1785 = vmatprep.subr.mxu0 0.0
    %1786 = vmatpush1.msra.mxu0 0.0
    %1787 = vmatprep.subr.mxu0 0.0
    %1788 = vmatpush1.msra.mxu0 0.0
    %1789 = vmatprep.subr.mxu0 0.0
    %1790 = vmatpush1.msra.mxu0 0.0
    %1791 = vmatprep.subr.mxu0 0.0
    %1792 = vmatpush1.msra.mxu0 0.0
    %1793 = vmatprep.subr.mxu0 0.0
    %1794 = vmatpush1.msra.mxu0 0.0
    %1795 = vmatprep.subr.mxu0 0.0
    %1796 = vmatpush1.msra.mxu0 0.0
    %1797 = vmatprep.subr.mxu0 0.0
    %1798 = vmatpush1.msra.mxu0 0.0
    %1799 = vmatprep.mubr.f32.mxu0 0.0
    %1800 = vmatmul.mubr.f32.gmra.mrb[0].mxu0 %v1733
    %v1801 = vpop.f32.mrb[0].mxu0
    %v1802 = vadd.f32 %v1730, %v1801
    %v1803 = vpop.f32.mrb[0].mxu0
    %v1804 = vadd.f32 %v1730, %v1803
    %1805 = vdwg.mxu0
    %v1808 = vcombine.low %v1802, %v1804
    %v1810 = vunpack.c.l.s4 1983009808
    %v1811 = vunpack.c.0.s8 %v1810
    %v1812 = vlaneseq
    %v1813 = vshrl.u32 %v1812, 7
    %v1814 = vsub.s32 %v1811, %v1813
    %v1815 = vrot.slane %v1808, %v1814
    %1817 = vst [vmem:[%s11] sm:$0xf] %v1815
    // Predicated region
    $region70: #{forward.1} parent=1 // pred_check
      _
    $region71: #{forward.1} parent=1 // pred_check_branch
      %1819 = sbr.rel (0) target = $region73
    $region72: #{forward.1} parent=1 // pred_region
      _
    $region73: #{forward.1} parent=1 // pred_fallthru
      _
    // Predicated region
    $region74: #{forward.1} parent=1 // pred_check
      _
    $region75: #{forward.1} parent=1 // pred_check_branch
      %1821 = sbr.rel (0) target = $region77
    $region76: #{forward.1} parent=1 // pred_region
      _
    $region77: #{forward.1} parent=1 // pred_fallthru
      _
    %1822 = vsyncpa [#allocation4], 1
    %1823 = vsyncpa [#allocation6], 1
    %1824 = vsyncpa [#allocation9], 1
    %1825 = vsyncpa [#allocation12], 1

</llo_original>
